<compile_context>
chip_gen: v5e
topology: v5e:2x2
jax: 0.10.0
libtpu: 0.0.40
codegen_flags: <defaults>
</compile_context>

<pallas_src>
import jax
import jax.numpy as jnp
from jax.experimental import pallas as pl
from jax.experimental.pallas import tpu as pltpu

EPS = 1e-5  # nn.BatchNorm2d default eps


# ---------------------------------------------------------------------------
# Fused kernel
# ---------------------------------------------------------------------------
def _make_fused_kernel(N, C, H, W, layers):
    R = N * C                     # sublane rows of one activation slab (= N*Co)
    HW = H * W                    # lanes
    inv_m = 1.0 / (N * H * W)     # BN averages over batch+spatial per channel
    TAPS = [(dh, dw) for dh in (-1, 0, 1) for dw in (-1, 0, 1)]  # tap t = (dh+1)*3 + (dw+1)

    def kernel(p_ref, w_ref, b_ref, m_ref, comb_ref, x_ref, o_ref, zs_ref):
        # p_ref    (layers-1,)      SMEM  p = sigmoid(p_pre)
        # w_ref    (layers*R, 9*R)  VMEM  block-diagonal conv weights (see pack_for_kernel)
        # b_ref    (layers*R, 1)    VMEM  per-row conv bias
        # m_ref    (9*R, HW)        VMEM  per-tap zero-padding masks, pre-broadcast over rows
        # comb_ref (R, R)           VMEM  comb[r,r2] = 1 if r == r2 (mod C)   (BN sample combine)
        # x_ref    (R, HW)          VMEM  x in (N*C, H*W) layout (plain reshape of NCHW)
        # o_ref    (R, HW)          VMEM
        # zs_ref   (9*R, HW)        VMEM scratch: stacked shifted/masked taps
        x = x_ref[...]
        comb = comb_ref[...]

        def batchnorm(t):
            # Train-mode BatchNorm2d(affine=False), two-pass batch stats (avoids E[x^2]-mean^2
            # cancellation). Rows {n*C+c : n} hold the same channel; the comb matmul (MXU) sums
            # them so per-channel stats land broadcast in every row; one lane-reduce finishes.
            s1 = jnp.sum(jnp.dot(comb, t, preferred_element_type=jnp.float32),
                         axis=-1, keepdims=True)                       # (R, 1)
            d = t - s1 * inv_m
            s2 = jnp.sum(jnp.dot(comb, d * d, preferred_element_type=jnp.float32),
                         axis=-1, keepdims=True)
            return d * jax.lax.rsqrt(s2 * inv_m + EPS)

        def build_taps(z):
            # zs_ref[t*R:(t+1)*R] = z shifted by tap (dh, dw), zeroed outside the image.
            # pltpu.roll = XLU lane rotate (overlaps with MXU/VPU work); masks are precomputed.
            for t, (dh, dw) in enumerate(TAPS):
                if dh == 0 and dw == 0:
                    zs_ref[t * R:(t + 1) * R, :] = z
                else:
                    shift = (-(dh * W + dw)) % HW      # rolled[:, j] = z[:, j + dh*W + dw]
                    rolled = pltpu.roll(z, shift, axis=1)
                    zs_ref[t * R:(t + 1) * R, :] = rolled * m_ref[t * R:(t + 1) * R, :]

        # bn_i(x) is identical for every layer i (same x, batch stats, affine=False).
        bnx = batchnorm(x)
        build_taps(bnx)
        # conv_l(bn(x)) + b_l for ALL layers in one MXU matmul: (layers*R, 9R) @ (9R, HW).
        conv_bnx = jnp.dot(w_ref[...], zs_ref[...],
                           preferred_element_type=jnp.float32) + b_ref[...]

        out = conv_bnx[0:R, :]                          # layer 0: conv0(bn0(x) + 0)
        for i in range(1, layers):
            nl = batchnorm(jnp.maximum(out, 0.0))       # BN(ReLU(out)), unscaled
            build_taps(nl)                              # reuse the tap scratch
            conv_nl = jnp.dot(w_ref[i * R:(i + 1) * R, :], zs_ref[...],
                              preferred_element_type=jnp.float32)
            # conv linearity: conv_i(bn(x) + p*nl) = conv_i(bn(x)) + b_i + p * conv_i(nl)
            out = conv_bnx[i * R:(i + 1) * R, :] + p_ref[i - 1] * conv_nl

        o_ref[...] = out

    return kernel


# ---------------------------------------------------------------------------
# Parameters (deterministic; same shapes / init rules as the PyTorch module)
# ---------------------------------------------------------------------------
def init_params(key, c_in, c_out, layers=3):
    assert c_in == c_out, "LinearTester's residual add requires inCh == outCh"
    conv_w, conv_b = [], []
    for _ in range(layers):
        key, sub = jax.random.split(key)
        fan_out = c_out * 3 * 3                         # kaiming_normal_(fan_out, relu)
        std = (2.0 / fan_out) ** 0.5
        conv_w.append(std * jax.random.normal(sub, (3, 3, c_in, c_out), jnp.float32))  # HWIO
        conv_b.append(jnp.zeros((c_out,), jnp.float32))                                # bias = 0
    # BatchNorm2d(affine=False): no learnable params.
    # TODO(synk): BN running_mean/var updates (track_running_stats), nonLinearLayersRecord and
    # the val_linearity path are not reproduced (not needed for forward()).
    p_pre = jnp.zeros((layers - 1,), jnp.float32)       # nonLinearLayers_p_pre
    return {"conv_w": conv_w, "conv_b": conv_b, "p_pre": p_pre}


# ---------------------------------------------------------------------------
# One-time packing: everything the kernel needs, precomputed outside the hot path
# ---------------------------------------------------------------------------
def pack_for_kernel(params, x_shape):
    N, C, H, W = x_shape
    layers = len(params["conv_w"])
    Co = params["conv_w"][0].shape[-1]
    assert Co == C
    R, HW = N * C, H * W

    p = jax.nn.sigmoid(params["p_pre"])                                    # get_p()

    # Block-diagonal weight: W[l*R + n*Co + co, t*N*C + m*C + ci] = delta(n,m) * w_l[kh,kw,ci,co]
    # so out_rows(l) = W_l @ Zs with Zs rows ordered (tap, sample, channel).
    w_stack = jnp.stack(params["conv_w"])                                  # (L, 3, 3, C, Co) HWIO
    wl = jnp.transpose(w_stack, (0, 4, 1, 2, 3)).reshape(layers, Co, 9, C)
    eye = jnp.eye(N, dtype=jnp.float32)
    w_big = jnp.einsum("nm,lcti->lnctmi", eye, wl).reshape(layers * N * Co, 9 * N * C)

    b_stack = jnp.stack(params["conv_b"])                                  # (L, Co)
    b_col = jnp.broadcast_to(b_stack[:, None, :], (layers, N, Co)).reshape(layers * N * Co, 1)

    # Per-tap validity masks for the implicit zero padding, pre-broadcast over the R rows so the
    # kernel applies them with plain full-width multiplies (no in-kernel iota/sublane-broadcasts).
    j = jnp.arange(HW)
    hpos, wpos = j // W, j % W
    rows = []
    for dh in (-1, 0, 1):
        for dw in (-1, 0, 1):
            valid = ((hpos + dh >= 0) & (hpos + dh < H) &
                     (wpos + dw >= 0) & (wpos + dw < W)).astype(jnp.float32)
            rows.append(jnp.broadcast_to(valid[None, :], (R, HW)))
    mask = jnp.concatenate(rows, axis=0)                                   # (9*R, HW)

    chan = jnp.arange(R) % C
    comb = (chan[:, None] == chan[None, :]).astype(jnp.float32)            # (R, R)

    return {"p": p, "w": w_big, "b": b_col, "mask": mask, "comb": comb}


# ---------------------------------------------------------------------------
# Full forward pass (LinearTester.forward) — single fused pallas_call
# ---------------------------------------------------------------------------
@jax.jit
def linear_tester_forward(x_nchw, packed):
    N, C, H, W = x_nchw.shape
    R, HW = N * C, H * W
    layers = packed["w"].shape[0] // R
    assert HW % 128 == 0 and R % 8 == 0, "kernel assumes a lane/sublane-dense (N*C, H*W) slab"

    x2 = x_nchw.reshape(R, HW)            # free reshape of contiguous NCHW (no transpose)

    kernel = _make_fused_kernel(N, C, H, W, layers)
    out2 = pl.pallas_call(
        kernel,
        out_shape=jax.ShapeDtypeStruct((R, HW), jnp.float32),
        in_specs=[
            pl.BlockSpec(memory_space=pltpu.MemorySpace.SMEM),   # p
            pl.BlockSpec(memory_space=pltpu.MemorySpace.VMEM),   # block-diag conv weights
            pl.BlockSpec(memory_space=pltpu.MemorySpace.VMEM),   # bias column
            pl.BlockSpec(memory_space=pltpu.MemorySpace.VMEM),   # zero-padding masks
            pl.BlockSpec(memory_space=pltpu.MemorySpace.VMEM),   # BN channel-combine matrix
            pl.BlockSpec(memory_space=pltpu.MemorySpace.VMEM),   # x
        ],
        out_specs=pl.BlockSpec(memory_space=pltpu.MemorySpace.VMEM),
        scratch_shapes=[pltpu.VMEM((9 * R, HW), jnp.float32)],   # shifted/masked tap stack
    )(packed["p"], packed["w"], packed["b"], packed["mask"], packed["comb"], x2)

    return out2.reshape(N, C, H, W)        # free reshape back to NCHW


# ---------------------------------------------------------------------------
# Pure-JAX reference (for correctness validation only)
# ---------------------------------------------------------------------------
def _forward_reference(x, params):
    p = jax.nn.sigmoid(params["p_pre"])

    def bn(t):
        mean = jnp.mean(t, axis=(0, 2, 3), keepdims=True)
        var = jnp.mean((t - mean) ** 2, axis=(0, 2, 3), keepdims=True)
        return (t - mean) * jax.lax.rsqrt(var + EPS)

    def conv(t, w, b):
        y = jax.lax.conv_general_dilated(
            t, w, window_strides=(1, 1), padding="SAME",
            dimension_numbers=("NCHW", "HWIO", "NCHW"),
            precision=jax.lax.Precision.HIGHEST)
        return y + b.reshape(1, -1, 1, 1)

    bnx = bn(x)
    out = conv(bnx, params["conv_w"][0], params["conv_b"][0])
    for i in range(1, len(params["conv_w"])):
        nl = bn(jnp.maximum(out, 0.0))
        out = conv(bnx + p[i - 1] * nl, params["conv_w"][i], params["conv_b"][i])
    return out


if __name__ == "__main__":
    key = jax.random.PRNGKey(0)
    kx, kp = jax.random.split(key)

    # input_size == output_size == (4, 16, 16), batch=2, layers=3
    N, C, H, W = 2, 4, 16, 16
    x = jax.random.normal(kx, (N, C, H, W), dtype=jnp.float32)
    params = init_params(kp, C, C, layers=3)
    packed = pack_for_kernel(params, x.shape)            # one-time prologue (not in hot path)

    out = linear_tester_forward(x, packed)
    jax.block_until_ready(out)
    assert out.shape == (N, C, H, W) and out.dtype == jnp.float32

    ref = _forward_reference(x, params)
    # Tolerance leaves headroom for the MXU's internal f32 pass decomposition vs. the
    # Precision.HIGHEST XLA conv reference; real layout/shift/mask bugs show up as O(1) errors.
    err = float(jnp.max(jnp.abs(out - ref)))
    assert jnp.allclose(out, ref, atol=1e-2, rtol=1e-2), err

    print("KERNEL_OK")
</pallas_src>

<mosaic_0001>
module attributes {stable_mosaic.version = 11 : i64} {
  func.func @kernel(%arg0: memref<2xf32, #tpu.memory_space<smem>>, %arg1: memref<24x72xf32, #tpu.memory_space<vmem>>, %arg2: memref<24x1xf32, #tpu.memory_space<vmem>>, %arg3: memref<72x256xf32, #tpu.memory_space<vmem>>, %arg4: memref<8x8xf32, #tpu.memory_space<vmem>>, %arg5: memref<8x256xf32, #tpu.memory_space<vmem>>, %arg6: memref<8x256xf32, #tpu.memory_space<vmem>>, %arg7: memref<72x256xf32, #tpu.memory_space<vmem>>) attributes {dimension_semantics = [], scalar_prefetch = 0 : i64, scratch_operands = 1 : i64, tpu.core_type = #tpu.core_type<tc>} {
    %c0 = arith.constant 0 : index
    %c0_0 = arith.constant 0 : index
    %0 = vector.load %arg5[%c0, %c0_0] : memref<8x256xf32, #tpu.memory_space<vmem>>, vector<8x256xf32>
    %c0_1 = arith.constant 0 : index
    %c0_2 = arith.constant 0 : index
    %1 = vector.load %arg4[%c0_1, %c0_2] : memref<8x8xf32, #tpu.memory_space<vmem>>, vector<8x8xf32>
    %cst = arith.constant dense<0.000000e+00> : vector<8x256xf32>
    %2 = tpu.matmul %1, %0, %cst {dimension_numbers = #tpu.dot_dimension_numbers<[1], [0], [0], [1], [0, 0, 1, 1], [], []>} : vector<8x8xf32>, vector<8x256xf32>, vector<8x256xf32> -> vector<8x256xf32>
    %cst_3 = arith.constant dense<0.000000e+00> : vector<8xf32>
    %3 = vector.multi_reduction <add>, %2, %cst_3 [1] : vector<8x256xf32> to vector<8xf32>
    %4 = vector.shape_cast %3 : vector<8xf32> to vector<8x1xf32>
    %cst_4 = arith.constant 0.001953125 : f32
    %5 = vector.broadcast %cst_4 : f32 to vector<8x1xf32>
    %6 = arith.mulf %4, %5 : vector<8x1xf32>
    %7 = vector.broadcast %6 : vector<8x1xf32> to vector<8x256xf32>
    %8 = arith.subf %0, %7 : vector<8x256xf32>
    %9 = arith.mulf %8, %8 : vector<8x256xf32>
    %cst_5 = arith.constant dense<0.000000e+00> : vector<8x256xf32>
    %10 = tpu.matmul %1, %9, %cst_5 {dimension_numbers = #tpu.dot_dimension_numbers<[1], [0], [0], [1], [0, 0, 1, 1], [], []>} : vector<8x8xf32>, vector<8x256xf32>, vector<8x256xf32> -> vector<8x256xf32>
    %cst_6 = arith.constant dense<0.000000e+00> : vector<8xf32>
    %11 = vector.multi_reduction <add>, %10, %cst_6 [1] : vector<8x256xf32> to vector<8xf32>
    %12 = vector.shape_cast %11 : vector<8xf32> to vector<8x1xf32>
    %cst_7 = arith.constant 0.001953125 : f32
    %13 = vector.broadcast %cst_7 : f32 to vector<8x1xf32>
    %14 = arith.mulf %12, %13 : vector<8x1xf32>
    %cst_8 = arith.constant 9.99999974E-6 : f32
    %15 = vector.broadcast %cst_8 : f32 to vector<8x1xf32>
    %16 = arith.addf %14, %15 : vector<8x1xf32>
    %17 = math.rsqrt %16 : vector<8x1xf32>
    %18 = vector.broadcast %17 : vector<8x1xf32> to vector<8x256xf32>
    %19 = arith.mulf %8, %18 : vector<8x256xf32>
    %c17_i32 = arith.constant 17 : i32
    %20 = tpu.dynamic_rotate %19 by %c17_i32 dim 1 : vector<8x256xf32>, i32 -> vector<8x256xf32>
    %c0_9 = arith.constant 0 : index
    %c0_10 = arith.constant 0 : index
    %21 = vector.load %arg3[%c0_9, %c0_10] : memref<72x256xf32, #tpu.memory_space<vmem>>, vector<8x256xf32>
    %22 = arith.mulf %20, %21 : vector<8x256xf32>
    %c0_11 = arith.constant 0 : index
    %c0_12 = arith.constant 0 : index
    %23 = vector.load %arg7[%c0_11, %c0_12] : memref<72x256xf32, #tpu.memory_space<vmem>>, vector<8x256xf32>
    tpu.vector_store %arg7[%c0_11, %c0_12], %22 {strides = array<i32>} : memref<72x256xf32, #tpu.memory_space<vmem>>, vector<8x256xf32>,
    %c16_i32 = arith.constant 16 : i32
    %24 = tpu.dynamic_rotate %19 by %c16_i32 dim 1 : vector<8x256xf32>, i32 -> vector<8x256xf32>
    %c8 = arith.constant 8 : index
    %c0_13 = arith.constant 0 : index
    %25 = vector.load %arg3[%c8, %c0_13] : memref<72x256xf32, #tpu.memory_space<vmem>>, vector<8x256xf32>
    %26 = arith.mulf %24, %25 : vector<8x256xf32>
    %c8_14 = arith.constant 8 : index
    %c0_15 = arith.constant 0 : index
    %27 = vector.load %arg7[%c8_14, %c0_15] : memref<72x256xf32, #tpu.memory_space<vmem>>, vector<8x256xf32>
    tpu.vector_store %arg7[%c8_14, %c0_15], %26 {strides = array<i32>} : memref<72x256xf32, #tpu.memory_space<vmem>>, vector<8x256xf32>,
    %c15_i32 = arith.constant 15 : i32
    %28 = tpu.dynamic_rotate %19 by %c15_i32 dim 1 : vector<8x256xf32>, i32 -> vector<8x256xf32>
    %c16 = arith.constant 16 : index
    %c0_16 = arith.constant 0 : index
    %29 = vector.load %arg3[%c16, %c0_16] : memref<72x256xf32, #tpu.memory_space<vmem>>, vector<8x256xf32>
    %30 = arith.mulf %28, %29 : vector<8x256xf32>
    %c16_17 = arith.constant 16 : index
    %c0_18 = arith.constant 0 : index
    %31 = vector.load %arg7[%c16_17, %c0_18] : memref<72x256xf32, #tpu.memory_space<vmem>>, vector<8x256xf32>
    tpu.vector_store %arg7[%c16_17, %c0_18], %30 {strides = array<i32>} : memref<72x256xf32, #tpu.memory_space<vmem>>, vector<8x256xf32>,
    %c1_i32 = arith.constant 1 : i32
    %32 = tpu.dynamic_rotate %19 by %c1_i32 dim 1 : vector<8x256xf32>, i32 -> vector<8x256xf32>
    %c24 = arith.constant 24 : index
    %c0_19 = arith.constant 0 : index
    %33 = vector.load %arg3[%c24, %c0_19] : memref<72x256xf32, #tpu.memory_space<vmem>>, vector<8x256xf32>
    %34 = arith.mulf %32, %33 : vector<8x256xf32>
    %c24_20 = arith.constant 24 : index
    %c0_21 = arith.constant 0 : index
    %35 = vector.load %arg7[%c24_20, %c0_21] : memref<72x256xf32, #tpu.memory_space<vmem>>, vector<8x256xf32>
    tpu.vector_store %arg7[%c24_20, %c0_21], %34 {strides = array<i32>} : memref<72x256xf32, #tpu.memory_space<vmem>>, vector<8x256xf32>,
    %c32 = arith.constant 32 : index
    %c0_22 = arith.constant 0 : index
    %36 = vector.load %arg7[%c32, %c0_22] : memref<72x256xf32, #tpu.memory_space<vmem>>, vector<8x256xf32>
    tpu.vector_store %arg7[%c32, %c0_22], %19 {strides = array<i32>} : memref<72x256xf32, #tpu.memory_space<vmem>>, vector<8x256xf32>,
    %c255_i32 = arith.constant 255 : i32
    %37 = tpu.dynamic_rotate %19 by %c255_i32 dim 1 : vector<8x256xf32>, i32 -> vector<8x256xf32>
    %c40 = arith.constant 40 : index
    %c0_23 = arith.constant 0 : index
    %38 = vector.load %arg3[%c40, %c0_23] : memref<72x256xf32, #tpu.memory_space<vmem>>, vector<8x256xf32>
    %39 = arith.mulf %37, %38 : vector<8x256xf32>
    %c40_24 = arith.constant 40 : index
    %c0_25 = arith.constant 0 : index
    %40 = vector.load %arg7[%c40_24, %c0_25] : memref<72x256xf32, #tpu.memory_space<vmem>>, vector<8x256xf32>
    tpu.vector_store %arg7[%c40_24, %c0_25], %39 {strides = array<i32>} : memref<72x256xf32, #tpu.memory_space<vmem>>, vector<8x256xf32>,
    %c241_i32 = arith.constant 241 : i32
    %41 = tpu.dynamic_rotate %19 by %c241_i32 dim 1 : vector<8x256xf32>, i32 -> vector<8x256xf32>
    %c48 = arith.constant 48 : index
    %c0_26 = arith.constant 0 : index
    %42 = vector.load %arg3[%c48, %c0_26] : memref<72x256xf32, #tpu.memory_space<vmem>>, vector<8x256xf32>
    %43 = arith.mulf %41, %42 : vector<8x256xf32>
    %c48_27 = arith.constant 48 : index
    %c0_28 = arith.constant 0 : index
    %44 = vector.load %arg7[%c48_27, %c0_28] : memref<72x256xf32, #tpu.memory_space<vmem>>, vector<8x256xf32>
    tpu.vector_store %arg7[%c48_27, %c0_28], %43 {strides = array<i32>} : memref<72x256xf32, #tpu.memory_space<vmem>>, vector<8x256xf32>,
    %c240_i32 = arith.constant 240 : i32
    %45 = tpu.dynamic_rotate %19 by %c240_i32 dim 1 : vector<8x256xf32>, i32 -> vector<8x256xf32>
    %c56 = arith.constant 56 : index
    %c0_29 = arith.constant 0 : index
    %46 = vector.load %arg3[%c56, %c0_29] : memref<72x256xf32, #tpu.memory_space<vmem>>, vector<8x256xf32>
    %47 = arith.mulf %45, %46 : vector<8x256xf32>
    %c56_30 = arith.constant 56 : index
    %c0_31 = arith.constant 0 : index
    %48 = vector.load %arg7[%c56_30, %c0_31] : memref<72x256xf32, #tpu.memory_space<vmem>>, vector<8x256xf32>
    tpu.vector_store %arg7[%c56_30, %c0_31], %47 {strides = array<i32>} : memref<72x256xf32, #tpu.memory_space<vmem>>, vector<8x256xf32>,
    %c239_i32 = arith.constant 239 : i32
    %49 = tpu.dynamic_rotate %19 by %c239_i32 dim 1 : vector<8x256xf32>, i32 -> vector<8x256xf32>
    %c64 = arith.constant 64 : index
    %c0_32 = arith.constant 0 : index
    %50 = vector.load %arg3[%c64, %c0_32] : memref<72x256xf32, #tpu.memory_space<vmem>>, vector<8x256xf32>
    %51 = arith.mulf %49, %50 : vector<8x256xf32>
    %c64_33 = arith.constant 64 : index
    %c0_34 = arith.constant 0 : index
    %52 = vector.load %arg7[%c64_33, %c0_34] : memref<72x256xf32, #tpu.memory_space<vmem>>, vector<8x256xf32>
    tpu.vector_store %arg7[%c64_33, %c0_34], %51 {strides = array<i32>} : memref<72x256xf32, #tpu.memory_space<vmem>>, vector<8x256xf32>,
    %c0_35 = arith.constant 0 : index
    %c0_36 = arith.constant 0 : index
    %53 = vector.load %arg1[%c0_35, %c0_36] : memref<24x72xf32, #tpu.memory_space<vmem>>, vector<24x72xf32>
    %c0_37 = arith.constant 0 : index
    %c0_38 = arith.constant 0 : index
    %54 = vector.load %arg7[%c0_37, %c0_38] : memref<72x256xf32, #tpu.memory_space<vmem>>, vector<72x256xf32>
    %cst_39 = arith.constant dense<0.000000e+00> : vector<24x256xf32>
    %55 = tpu.matmul %53, %54, %cst_39 {dimension_numbers = #tpu.dot_dimension_numbers<[1], [0], [0], [1], [0, 0, 1, 1], [], []>} : vector<24x72xf32>, vector<72x256xf32>, vector<24x256xf32> -> vector<24x256xf32>
    %c0_40 = arith.constant 0 : index
    %c0_41 = arith.constant 0 : index
    %56 = vector.load %arg2[%c0_40, %c0_41] : memref<24x1xf32, #tpu.memory_space<vmem>>, vector<24x1xf32>
    %57 = vector.broadcast %56 : vector<24x1xf32> to vector<24x256xf32>
    %58 = arith.addf %55, %57 : vector<24x256xf32>
    %59 = vector.extract_strided_slice %58 {offsets = [0, 0], sizes = [8, 256], strides = [1, 1]} : vector<24x256xf32> to vector<8x256xf32>
    %cst_42 = arith.constant 0.000000e+00 : f32
    %60 = vector.broadcast %cst_42 : f32 to vector<8x256xf32>
    %61 = arith.maximumf %59, %60 : vector<8x256xf32>
    %cst_43 = arith.constant dense<0.000000e+00> : vector<8x256xf32>
    %62 = tpu.matmul %1, %61, %cst_43 {dimension_numbers = #tpu.dot_dimension_numbers<[1], [0], [0], [1], [0, 0, 1, 1], [], []>} : vector<8x8xf32>, vector<8x256xf32>, vector<8x256xf32> -> vector<8x256xf32>
    %cst_44 = arith.constant dense<0.000000e+00> : vector<8xf32>
    %63 = vector.multi_reduction <add>, %62, %cst_44 [1] : vector<8x256xf32> to vector<8xf32>
    %64 = vector.shape_cast %63 : vector<8xf32> to vector<8x1xf32>
    %cst_45 = arith.constant 0.001953125 : f32
    %65 = vector.broadcast %cst_45 : f32 to vector<8x1xf32>
    %66 = arith.mulf %64, %65 : vector<8x1xf32>
    %67 = vector.broadcast %66 : vector<8x1xf32> to vector<8x256xf32>
    %68 = arith.subf %61, %67 : vector<8x256xf32>
    %69 = arith.mulf %68, %68 : vector<8x256xf32>
    %cst_46 = arith.constant dense<0.000000e+00> : vector<8x256xf32>
    %70 = tpu.matmul %1, %69, %cst_46 {dimension_numbers = #tpu.dot_dimension_numbers<[1], [0], [0], [1], [0, 0, 1, 1], [], []>} : vector<8x8xf32>, vector<8x256xf32>, vector<8x256xf32> -> vector<8x256xf32>
    %cst_47 = arith.constant dense<0.000000e+00> : vector<8xf32>
    %71 = vector.multi_reduction <add>, %70, %cst_47 [1] : vector<8x256xf32> to vector<8xf32>
    %72 = vector.shape_cast %71 : vector<8xf32> to vector<8x1xf32>
    %cst_48 = arith.constant 0.001953125 : f32
    %73 = vector.broadcast %cst_48 : f32 to vector<8x1xf32>
    %74 = arith.mulf %72, %73 : vector<8x1xf32>
    %cst_49 = arith.constant 9.99999974E-6 : f32
    %75 = vector.broadcast %cst_49 : f32 to vector<8x1xf32>
    %76 = arith.addf %74, %75 : vector<8x1xf32>
    %77 = math.rsqrt %76 : vector<8x1xf32>
    %78 = vector.broadcast %77 : vector<8x1xf32> to vector<8x256xf32>
    %79 = arith.mulf %68, %78 : vector<8x256xf32>
    %c17_i32_50 = arith.constant 17 : i32
    %80 = tpu.dynamic_rotate %79 by %c17_i32_50 dim 1 : vector<8x256xf32>, i32 -> vector<8x256xf32>
    %c0_51 = arith.constant 0 : index
    %c0_52 = arith.constant 0 : index
    %81 = vector.load %arg3[%c0_51, %c0_52] : memref<72x256xf32, #tpu.memory_space<vmem>>, vector<8x256xf32>
    %82 = arith.mulf %80, %81 : vector<8x256xf32>
    %c0_53 = arith.constant 0 : index
    %c0_54 = arith.constant 0 : index
    %83 = vector.load %arg7[%c0_53, %c0_54] : memref<72x256xf32, #tpu.memory_space<vmem>>, vector<8x256xf32>
    tpu.vector_store %arg7[%c0_53, %c0_54], %82 {strides = array<i32>} : memref<72x256xf32, #tpu.memory_space<vmem>>, vector<8x256xf32>,
    %c16_i32_55 = arith.constant 16 : i32
    %84 = tpu.dynamic_rotate %79 by %c16_i32_55 dim 1 : vector<8x256xf32>, i32 -> vector<8x256xf32>
    %c8_56 = arith.constant 8 : index
    %c0_57 = arith.constant 0 : index
    %85 = vector.load %arg3[%c8_56, %c0_57] : memref<72x256xf32, #tpu.memory_space<vmem>>, vector<8x256xf32>
    %86 = arith.mulf %84, %85 : vector<8x256xf32>
    %c8_58 = arith.constant 8 : index
    %c0_59 = arith.constant 0 : index
    %87 = vector.load %arg7[%c8_58, %c0_59] : memref<72x256xf32, #tpu.memory_space<vmem>>, vector<8x256xf32>
    tpu.vector_store %arg7[%c8_58, %c0_59], %86 {strides = array<i32>} : memref<72x256xf32, #tpu.memory_space<vmem>>, vector<8x256xf32>,
    %c15_i32_60 = arith.constant 15 : i32
    %88 = tpu.dynamic_rotate %79 by %c15_i32_60 dim 1 : vector<8x256xf32>, i32 -> vector<8x256xf32>
    %c16_61 = arith.constant 16 : index
    %c0_62 = arith.constant 0 : index
    %89 = vector.load %arg3[%c16_61, %c0_62] : memref<72x256xf32, #tpu.memory_space<vmem>>, vector<8x256xf32>
    %90 = arith.mulf %88, %89 : vector<8x256xf32>
    %c16_63 = arith.constant 16 : index
    %c0_64 = arith.constant 0 : index
    %91 = vector.load %arg7[%c16_63, %c0_64] : memref<72x256xf32, #tpu.memory_space<vmem>>, vector<8x256xf32>
    tpu.vector_store %arg7[%c16_63, %c0_64], %90 {strides = array<i32>} : memref<72x256xf32, #tpu.memory_space<vmem>>, vector<8x256xf32>,
    %c1_i32_65 = arith.constant 1 : i32
    %92 = tpu.dynamic_rotate %79 by %c1_i32_65 dim 1 : vector<8x256xf32>, i32 -> vector<8x256xf32>
    %c24_66 = arith.constant 24 : index
    %c0_67 = arith.constant 0 : index
    %93 = vector.load %arg3[%c24_66, %c0_67] : memref<72x256xf32, #tpu.memory_space<vmem>>, vector<8x256xf32>
    %94 = arith.mulf %92, %93 : vector<8x256xf32>
    %c24_68 = arith.constant 24 : index
    %c0_69 = arith.constant 0 : index
    %95 = vector.load %arg7[%c24_68, %c0_69] : memref<72x256xf32, #tpu.memory_space<vmem>>, vector<8x256xf32>
    tpu.vector_store %arg7[%c24_68, %c0_69], %94 {strides = array<i32>} : memref<72x256xf32, #tpu.memory_space<vmem>>, vector<8x256xf32>,
    %c32_70 = arith.constant 32 : index
    %c0_71 = arith.constant 0 : index
    %96 = vector.load %arg7[%c32_70, %c0_71] : memref<72x256xf32, #tpu.memory_space<vmem>>, vector<8x256xf32>
    tpu.vector_store %arg7[%c32_70, %c0_71], %79 {strides = array<i32>} : memref<72x256xf32, #tpu.memory_space<vmem>>, vector<8x256xf32>,
    %c255_i32_72 = arith.constant 255 : i32
    %97 = tpu.dynamic_rotate %79 by %c255_i32_72 dim 1 : vector<8x256xf32>, i32 -> vector<8x256xf32>
    %c40_73 = arith.constant 40 : index
    %c0_74 = arith.constant 0 : index
    %98 = vector.load %arg3[%c40_73, %c0_74] : memref<72x256xf32, #tpu.memory_space<vmem>>, vector<8x256xf32>
    %99 = arith.mulf %97, %98 : vector<8x256xf32>
    %c40_75 = arith.constant 40 : index
    %c0_76 = arith.constant 0 : index
    %100 = vector.load %arg7[%c40_75, %c0_76] : memref<72x256xf32, #tpu.memory_space<vmem>>, vector<8x256xf32>
    tpu.vector_store %arg7[%c40_75, %c0_76], %99 {strides = array<i32>} : memref<72x256xf32, #tpu.memory_space<vmem>>, vector<8x256xf32>,
    %c241_i32_77 = arith.constant 241 : i32
    %101 = tpu.dynamic_rotate %79 by %c241_i32_77 dim 1 : vector<8x256xf32>, i32 -> vector<8x256xf32>
    %c48_78 = arith.constant 48 : index
    %c0_79 = arith.constant 0 : index
    %102 = vector.load %arg3[%c48_78, %c0_79] : memref<72x256xf32, #tpu.memory_space<vmem>>, vector<8x256xf32>
    %103 = arith.mulf %101, %102 : vector<8x256xf32>
    %c48_80 = arith.constant 48 : index
    %c0_81 = arith.constant 0 : index
    %104 = vector.load %arg7[%c48_80, %c0_81] : memref<72x256xf32, #tpu.memory_space<vmem>>, vector<8x256xf32>
    tpu.vector_store %arg7[%c48_80, %c0_81], %103 {strides = array<i32>} : memref<72x256xf32, #tpu.memory_space<vmem>>, vector<8x256xf32>,
    %c240_i32_82 = arith.constant 240 : i32
    %105 = tpu.dynamic_rotate %79 by %c240_i32_82 dim 1 : vector<8x256xf32>, i32 -> vector<8x256xf32>
    %c56_83 = arith.constant 56 : index
    %c0_84 = arith.constant 0 : index
    %106 = vector.load %arg3[%c56_83, %c0_84] : memref<72x256xf32, #tpu.memory_space<vmem>>, vector<8x256xf32>
    %107 = arith.mulf %105, %106 : vector<8x256xf32>
    %c56_85 = arith.constant 56 : index
    %c0_86 = arith.constant 0 : index
    %108 = vector.load %arg7[%c56_85, %c0_86] : memref<72x256xf32, #tpu.memory_space<vmem>>, vector<8x256xf32>
    tpu.vector_store %arg7[%c56_85, %c0_86], %107 {strides = array<i32>} : memref<72x256xf32, #tpu.memory_space<vmem>>, vector<8x256xf32>,
    %c239_i32_87 = arith.constant 239 : i32
    %109 = tpu.dynamic_rotate %79 by %c239_i32_87 dim 1 : vector<8x256xf32>, i32 -> vector<8x256xf32>
    %c64_88 = arith.constant 64 : index
    %c0_89 = arith.constant 0 : index
    %110 = vector.load %arg3[%c64_88, %c0_89] : memref<72x256xf32, #tpu.memory_space<vmem>>, vector<8x256xf32>
    %111 = arith.mulf %109, %110 : vector<8x256xf32>
    %c64_90 = arith.constant 64 : index
    %c0_91 = arith.constant 0 : index
    %112 = vector.load %arg7[%c64_90, %c0_91] : memref<72x256xf32, #tpu.memory_space<vmem>>, vector<8x256xf32>
    tpu.vector_store %arg7[%c64_90, %c0_91], %111 {strides = array<i32>} : memref<72x256xf32, #tpu.memory_space<vmem>>, vector<8x256xf32>,
    %c8_92 = arith.constant 8 : index
    %c0_93 = arith.constant 0 : index
    %113 = vector.load %arg1[%c8_92, %c0_93] : memref<24x72xf32, #tpu.memory_space<vmem>>, vector<8x72xf32>
    %c0_94 = arith.constant 0 : index
    %c0_95 = arith.constant 0 : index
    %114 = vector.load %arg7[%c0_94, %c0_95] : memref<72x256xf32, #tpu.memory_space<vmem>>, vector<72x256xf32>
    %cst_96 = arith.constant dense<0.000000e+00> : vector<8x256xf32>
    %115 = tpu.matmul %113, %114, %cst_96 {dimension_numbers = #tpu.dot_dimension_numbers<[1], [0], [0], [1], [0, 0, 1, 1], [], []>} : vector<8x72xf32>, vector<72x256xf32>, vector<8x256xf32> -> vector<8x256xf32>
    %116 = vector.extract_strided_slice %58 {offsets = [8, 0], sizes = [8, 256], strides = [1, 1]} : vector<24x256xf32> to vector<8x256xf32>
    %c0_97 = arith.constant 0 : index
    %117 = memref.load %arg0[%c0_97] : memref<2xf32, #tpu.memory_space<smem>>
    %118 = vector.broadcast %117 : f32 to vector<8x256xf32>
    %119 = arith.mulf %118, %115 : vector<8x256xf32>
    %120 = arith.addf %116, %119 : vector<8x256xf32>
    %cst_98 = arith.constant 0.000000e+00 : f32
    %121 = vector.broadcast %cst_98 : f32 to vector<8x256xf32>
    %122 = arith.maximumf %120, %121 : vector<8x256xf32>
    %cst_99 = arith.constant dense<0.000000e+00> : vector<8x256xf32>
    %123 = tpu.matmul %1, %122, %cst_99 {dimension_numbers = #tpu.dot_dimension_numbers<[1], [0], [0], [1], [0, 0, 1, 1], [], []>} : vector<8x8xf32>, vector<8x256xf32>, vector<8x256xf32> -> vector<8x256xf32>
    %cst_100 = arith.constant dense<0.000000e+00> : vector<8xf32>
    %124 = vector.multi_reduction <add>, %123, %cst_100 [1] : vector<8x256xf32> to vector<8xf32>
    %125 = vector.shape_cast %124 : vector<8xf32> to vector<8x1xf32>
    %cst_101 = arith.constant 0.001953125 : f32
    %126 = vector.broadcast %cst_101 : f32 to vector<8x1xf32>
    %127 = arith.mulf %125, %126 : vector<8x1xf32>
    %128 = vector.broadcast %127 : vector<8x1xf32> to vector<8x256xf32>
    %129 = arith.subf %122, %128 : vector<8x256xf32>
    %130 = arith.mulf %129, %129 : vector<8x256xf32>
    %cst_102 = arith.constant dense<0.000000e+00> : vector<8x256xf32>
    %131 = tpu.matmul %1, %130, %cst_102 {dimension_numbers = #tpu.dot_dimension_numbers<[1], [0], [0], [1], [0, 0, 1, 1], [], []>} : vector<8x8xf32>, vector<8x256xf32>, vector<8x256xf32> -> vector<8x256xf32>
    %cst_103 = arith.constant dense<0.000000e+00> : vector<8xf32>
    %132 = vector.multi_reduction <add>, %131, %cst_103 [1] : vector<8x256xf32> to vector<8xf32>
    %133 = vector.shape_cast %132 : vector<8xf32> to vector<8x1xf32>
    %cst_104 = arith.constant 0.001953125 : f32
    %134 = vector.broadcast %cst_104 : f32 to vector<8x1xf32>
    %135 = arith.mulf %133, %134 : vector<8x1xf32>
    %cst_105 = arith.constant 9.99999974E-6 : f32
    %136 = vector.broadcast %cst_105 : f32 to vector<8x1xf32>
    %137 = arith.addf %135, %136 : vector<8x1xf32>
    %138 = math.rsqrt %137 : vector<8x1xf32>
    %139 = vector.broadcast %138 : vector<8x1xf32> to vector<8x256xf32>
    %140 = arith.mulf %129, %139 : vector<8x256xf32>
    %c17_i32_106 = arith.constant 17 : i32
    %141 = tpu.dynamic_rotate %140 by %c17_i32_106 dim 1 : vector<8x256xf32>, i32 -> vector<8x256xf32>
    %c0_107 = arith.constant 0 : index
    %c0_108 = arith.constant 0 : index
    %142 = vector.load %arg3[%c0_107, %c0_108] : memref<72x256xf32, #tpu.memory_space<vmem>>, vector<8x256xf32>
    %143 = arith.mulf %141, %142 : vector<8x256xf32>
    %c0_109 = arith.constant 0 : index
    %c0_110 = arith.constant 0 : index
    %144 = vector.load %arg7[%c0_109, %c0_110] : memref<72x256xf32, #tpu.memory_space<vmem>>, vector<8x256xf32>
    tpu.vector_store %arg7[%c0_109, %c0_110], %143 {strides = array<i32>} : memref<72x256xf32, #tpu.memory_space<vmem>>, vector<8x256xf32>,
    %c16_i32_111 = arith.constant 16 : i32
    %145 = tpu.dynamic_rotate %140 by %c16_i32_111 dim 1 : vector<8x256xf32>, i32 -> vector<8x256xf32>
    %c8_112 = arith.constant 8 : index
    %c0_113 = arith.constant 0 : index
    %146 = vector.load %arg3[%c8_112, %c0_113] : memref<72x256xf32, #tpu.memory_space<vmem>>, vector<8x256xf32>
    %147 = arith.mulf %145, %146 : vector<8x256xf32>
    %c8_114 = arith.constant 8 : index
    %c0_115 = arith.constant 0 : index
    %148 = vector.load %arg7[%c8_114, %c0_115] : memref<72x256xf32, #tpu.memory_space<vmem>>, vector<8x256xf32>
    tpu.vector_store %arg7[%c8_114, %c0_115], %147 {strides = array<i32>} : memref<72x256xf32, #tpu.memory_space<vmem>>, vector<8x256xf32>,
    %c15_i32_116 = arith.constant 15 : i32
    %149 = tpu.dynamic_rotate %140 by %c15_i32_116 dim 1 : vector<8x256xf32>, i32 -> vector<8x256xf32>
    %c16_117 = arith.constant 16 : index
    %c0_118 = arith.constant 0 : index
    %150 = vector.load %arg3[%c16_117, %c0_118] : memref<72x256xf32, #tpu.memory_space<vmem>>, vector<8x256xf32>
    %151 = arith.mulf %149, %150 : vector<8x256xf32>
    %c16_119 = arith.constant 16 : index
    %c0_120 = arith.constant 0 : index
    %152 = vector.load %arg7[%c16_119, %c0_120] : memref<72x256xf32, #tpu.memory_space<vmem>>, vector<8x256xf32>
    tpu.vector_store %arg7[%c16_119, %c0_120], %151 {strides = array<i32>} : memref<72x256xf32, #tpu.memory_space<vmem>>, vector<8x256xf32>,
    %c1_i32_121 = arith.constant 1 : i32
    %153 = tpu.dynamic_rotate %140 by %c1_i32_121 dim 1 : vector<8x256xf32>, i32 -> vector<8x256xf32>
    %c24_122 = arith.constant 24 : index
    %c0_123 = arith.constant 0 : index
    %154 = vector.load %arg3[%c24_122, %c0_123] : memref<72x256xf32, #tpu.memory_space<vmem>>, vector<8x256xf32>
    %155 = arith.mulf %153, %154 : vector<8x256xf32>
    %c24_124 = arith.constant 24 : index
    %c0_125 = arith.constant 0 : index
    %156 = vector.load %arg7[%c24_124, %c0_125] : memref<72x256xf32, #tpu.memory_space<vmem>>, vector<8x256xf32>
    tpu.vector_store %arg7[%c24_124, %c0_125], %155 {strides = array<i32>} : memref<72x256xf32, #tpu.memory_space<vmem>>, vector<8x256xf32>,
    %c32_126 = arith.constant 32 : index
    %c0_127 = arith.constant 0 : index
    %157 = vector.load %arg7[%c32_126, %c0_127] : memref<72x256xf32, #tpu.memory_space<vmem>>, vector<8x256xf32>
    tpu.vector_store %arg7[%c32_126, %c0_127], %140 {strides = array<i32>} : memref<72x256xf32, #tpu.memory_space<vmem>>, vector<8x256xf32>,
    %c255_i32_128 = arith.constant 255 : i32
    %158 = tpu.dynamic_rotate %140 by %c255_i32_128 dim 1 : vector<8x256xf32>, i32 -> vector<8x256xf32>
    %c40_129 = arith.constant 40 : index
    %c0_130 = arith.constant 0 : index
    %159 = vector.load %arg3[%c40_129, %c0_130] : memref<72x256xf32, #tpu.memory_space<vmem>>, vector<8x256xf32>
    %160 = arith.mulf %158, %159 : vector<8x256xf32>
    %c40_131 = arith.constant 40 : index
    %c0_132 = arith.constant 0 : index
    %161 = vector.load %arg7[%c40_131, %c0_132] : memref<72x256xf32, #tpu.memory_space<vmem>>, vector<8x256xf32>
    tpu.vector_store %arg7[%c40_131, %c0_132], %160 {strides = array<i32>} : memref<72x256xf32, #tpu.memory_space<vmem>>, vector<8x256xf32>,
    %c241_i32_133 = arith.constant 241 : i32
    %162 = tpu.dynamic_rotate %140 by %c241_i32_133 dim 1 : vector<8x256xf32>, i32 -> vector<8x256xf32>
    %c48_134 = arith.constant 48 : index
    %c0_135 = arith.constant 0 : index
    %163 = vector.load %arg3[%c48_134, %c0_135] : memref<72x256xf32, #tpu.memory_space<vmem>>, vector<8x256xf32>
    %164 = arith.mulf %162, %163 : vector<8x256xf32>
    %c48_136 = arith.constant 48 : index
    %c0_137 = arith.constant 0 : index
    %165 = vector.load %arg7[%c48_136, %c0_137] : memref<72x256xf32, #tpu.memory_space<vmem>>, vector<8x256xf32>
    tpu.vector_store %arg7[%c48_136, %c0_137], %164 {strides = array<i32>} : memref<72x256xf32, #tpu.memory_space<vmem>>, vector<8x256xf32>,
    %c240_i32_138 = arith.constant 240 : i32
    %166 = tpu.dynamic_rotate %140 by %c240_i32_138 dim 1 : vector<8x256xf32>, i32 -> vector<8x256xf32>
    %c56_139 = arith.constant 56 : index
    %c0_140 = arith.constant 0 : index
    %167 = vector.load %arg3[%c56_139, %c0_140] : memref<72x256xf32, #tpu.memory_space<vmem>>, vector<8x256xf32>
    %168 = arith.mulf %166, %167 : vector<8x256xf32>
    %c56_141 = arith.constant 56 : index
    %c0_142 = arith.constant 0 : index
    %169 = vector.load %arg7[%c56_141, %c0_142] : memref<72x256xf32, #tpu.memory_space<vmem>>, vector<8x256xf32>
    tpu.vector_store %arg7[%c56_141, %c0_142], %168 {strides = array<i32>} : memref<72x256xf32, #tpu.memory_space<vmem>>, vector<8x256xf32>,
    %c239_i32_143 = arith.constant 239 : i32
    %170 = tpu.dynamic_rotate %140 by %c239_i32_143 dim 1 : vector<8x256xf32>, i32 -> vector<8x256xf32>
    %c64_144 = arith.constant 64 : index
    %c0_145 = arith.constant 0 : index
    %171 = vector.load %arg3[%c64_144, %c0_145] : memref<72x256xf32, #tpu.memory_space<vmem>>, vector<8x256xf32>
    %172 = arith.mulf %170, %171 : vector<8x256xf32>
    %c64_146 = arith.constant 64 : index
    %c0_147 = arith.constant 0 : index
    %173 = vector.load %arg7[%c64_146, %c0_147] : memref<72x256xf32, #tpu.memory_space<vmem>>, vector<8x256xf32>
    tpu.vector_store %arg7[%c64_146, %c0_147], %172 {strides = array<i32>} : memref<72x256xf32, #tpu.memory_space<vmem>>, vector<8x256xf32>,
    %c16_148 = arith.constant 16 : index
    %c0_149 = arith.constant 0 : index
    %174 = vector.load %arg1[%c16_148, %c0_149] : memref<24x72xf32, #tpu.memory_space<vmem>>, vector<8x72xf32>
    %c0_150 = arith.constant 0 : index
    %c0_151 = arith.constant 0 : index
    %175 = vector.load %arg7[%c0_150, %c0_151] : memref<72x256xf32, #tpu.memory_space<vmem>>, vector<72x256xf32>
    %cst_152 = arith.constant dense<0.000000e+00> : vector<8x256xf32>
    %176 = tpu.matmul %174, %175, %cst_152 {dimension_numbers = #tpu.dot_dimension_numbers<[1], [0], [0], [1], [0, 0, 1, 1], [], []>} : vector<8x72xf32>, vector<72x256xf32>, vector<8x256xf32> -> vector<8x256xf32>
    %177 = vector.extract_strided_slice %58 {offsets = [16, 0], sizes = [8, 256], strides = [1, 1]} : vector<24x256xf32> to vector<8x256xf32>
    %c1 = arith.constant 1 : index
    %178 = memref.load %arg0[%c1] : memref<2xf32, #tpu.memory_space<smem>>
    %179 = vector.broadcast %178 : f32 to vector<8x256xf32>
    %180 = arith.mulf %179, %176 : vector<8x256xf32>
    %181 = arith.addf %177, %180 : vector<8x256xf32>
    %c0_153 = arith.constant 0 : index
    %c0_154 = arith.constant 0 : index
    %182 = vector.load %arg6[%c0_153, %c0_154] : memref<8x256xf32, #tpu.memory_space<vmem>>, vector<8x256xf32>
    tpu.vector_store %arg6[%c0_153, %c0_154], %181 {strides = array<i32>} : memref<8x256xf32, #tpu.memory_space<vmem>>, vector<8x256xf32>,
    return
  }
}

</mosaic_0001>

<llo_original>
// kernel: linear_tester_forward.1
$region0: #{linear_tester_forward.1}
  #allocation0 [shape = 'u32[]', space=smem, size = 0x4, offset = 0x4, fixed_abs, tag = 'smem constant byte address 0x4 - core index']
  #allocation1 [shape = 'u32[72,128]{1,0:T(1,128)}', space=vmem, size = 0x9000, scoped, tag = 'internal scratch']
  #allocation2 [shape = 'f32[72,256]{1,0:T(8,128)}', space=vmem, size = 0x12000, scoped, tag = 'scratch operand']
  %s0 = inlined_call_operand.vmem [shape: f32[2], index: 0, kind: input, shape index: {}]
  %s1 = inlined_call_operand.vmem [shape: f32[24,72], index: 1, kind: input, shape index: {}]
  %s2 = inlined_call_operand.vmem [shape: f32[24,1], index: 2, kind: input, shape index: {}]
  %s3 = inlined_call_operand.vmem [shape: f32[72,256], index: 3, kind: input, shape index: {}]
  %s4 = inlined_call_operand.hbm [shape: f32[8,8], index: 4, kind: input, shape index: {}]
  %s5 = inlined_call_operand.vmem [shape: f32[8,256], index: 5, kind: input, shape index: {}]
  %s6 = inlined_call_operand.vmem [shape: f32[8,256], index: 6, kind: output, shape index: {}]
  %s7 = sld [smem:[#allocation0]]
  $region42: #{linear_tester_forward.1} parent=0
    _
  %s9 = ssub.s32 1, %s7
  %s10 = scalar_select 0, %s9, %s7
  $region1: #{linear_tester_forward.1} parent=0
    #allocation3 [shape = 'u8[512]{0}', space=smem, size = 0x200, scoped, tag = 'input window, operand 0, single buffered']
    #allocation4 [shape = 's32[1]{0}', space=sflag, size = 0x4, scoped, tag = 'scoped memory for linear_tester_forward.1']
    #allocation5 [shape = 's32[1]{0}', space=sflag, size = 0x4, scoped, tag = 'scoped memory for linear_tester_forward.1']
    #allocation6 [shape = 'u8[4096]{0}', space=vmem, size = 0x1000, scoped, tag = 'input window, operand 4, single buffered']
    %11 = vsyncpa [#allocation5], 0
    %12 = vsyncpa [#allocation4], 0
    // Predicated region
    $region2: #{linear_tester_forward.1} parent=1 // pred_check
      _
    $region3: #{linear_tester_forward.1} parent=1 // pred_check_branch
      %14 = sbr.rel (0) target = $region5
    $region4: #{linear_tester_forward.1} parent=1 // pred_region
      %16 = vsyncadd [#allocation5], 0
      %s18 = sshll.u32 %s0, 4
      %s19 = int_to_ptr.vmem [resolvable:$true] %s18
      %21 = dma.vmem_to_smem %s19, 16, [#allocation3], [#allocation5]
    $region5: #{linear_tester_forward.1} parent=1 // pred_fallthru
      _
    // Predicated region
    $region6: #{linear_tester_forward.1} parent=1 // pred_check
      _
    $region7: #{linear_tester_forward.1} parent=1 // pred_check_branch
      %23 = sbr.rel (0) target = $region9
    $region8: #{linear_tester_forward.1} parent=1 // pred_region
      _
    $region9: #{linear_tester_forward.1} parent=1 // pred_fallthru
      _
    // Predicated region
    $region10: #{linear_tester_forward.1} parent=1 // pred_check
      _
    $region11: #{linear_tester_forward.1} parent=1 // pred_check_branch
      %25 = sbr.rel (0) target = $region13
    $region12: #{linear_tester_forward.1} parent=1 // pred_region
      _
    $region13: #{linear_tester_forward.1} parent=1 // pred_fallthru
      _
    // Predicated region
    $region14: #{linear_tester_forward.1} parent=1 // pred_check
      _
    $region15: #{linear_tester_forward.1} parent=1 // pred_check_branch
      %27 = sbr.rel (0) target = $region17
    $region16: #{linear_tester_forward.1} parent=1 // pred_region
      _
    $region17: #{linear_tester_forward.1} parent=1 // pred_fallthru
      _
    // Predicated region
    $region18: #{linear_tester_forward.1} parent=1 // pred_check
      _
    $region19: #{linear_tester_forward.1} parent=1 // pred_check_branch
      %29 = sbr.rel (0) target = $region21
    $region20: #{linear_tester_forward.1} parent=1 // pred_region
      %31 = vsyncadd [#allocation4], 0
      %s33 = sshll.u32 %s4, 4
      %s34 = int_to_ptr.hbm [resolvable:$true] %s33
      %s35 = sshll.u32 [#allocation6], 4
      %s36 = int_to_ptr.vmem [resolvable:$true] %s35
      %38 = dma.hbm_to_vmem [thread:$0]  %s34, 128, %s36, [#allocation4]
    $region21: #{linear_tester_forward.1} parent=1 // pred_fallthru
      _
    // Predicated region
    $region22: #{linear_tester_forward.1} parent=1 // pred_check
      _
    $region23: #{linear_tester_forward.1} parent=1 // pred_check_branch
      %40 = sbr.rel (0) target = $region25
    $region24: #{linear_tester_forward.1} parent=1 // pred_region
      _
    $region25: #{linear_tester_forward.1} parent=1 // pred_fallthru
      _
    // Predicated region
    $region26: #{linear_tester_forward.1} parent=1 // pred_check
      _
    $region27: #{linear_tester_forward.1} parent=1 // pred_check_branch
      %42 = sbr.rel (0) target = $region29
    $region28: #{linear_tester_forward.1} parent=1 // pred_region
      %44 = dma.done [#allocation5], 16
    $region29: #{linear_tester_forward.1} parent=1 // pred_fallthru
      _
    // Predicated region
    $region30: #{linear_tester_forward.1} parent=1 // pred_check
      _
    $region31: #{linear_tester_forward.1} parent=1 // pred_check_branch
      %46 = sbr.rel (0) target = $region33
    $region32: #{linear_tester_forward.1} parent=1 // pred_region
      %48 = dma.done [#allocation4], 128
    $region33: #{linear_tester_forward.1} parent=1 // pred_fallthru
      _
    %49 = sfence
    %v50 = vld [vmem:[%s5] sm:$0xff]
    %v51 = vld [vmem:[%s5 + $0x8] sm:$0xff]
    %v52 = vld [vmem:[#allocation6] sm:$0xff]
    %vm53 = vcmask 64512
    %v55 = vsel %vm53, %v52, 0
    %57 = vmatpush.msra.mxu0 0.0
    %58 = vmatpush.msra.mxu0 0.0
    %59 = vmatpush.msra.mxu0 0.0
    %60 = vmatpush.msra.mxu0 0.0
    %61 = vmatpush.msra.mxu0 0.0
    %62 = vmatpush.msra.mxu0 0.0
    %63 = vmatpush.msra.mxu0 0.0
    %64 = vmatpush.msra.mxu0 0.0
    %65 = vmatpush.msra.mxu0 0.0
    %66 = vmatpush.msra.mxu0 0.0
    %67 = vmatpush.msra.mxu0 0.0
    %68 = vmatpush.msra.mxu0 0.0
    %69 = vmatpush.msra.mxu0 0.0
    %70 = vmatpush.msra.mxu0 0.0
    %71 = vmatpush.msra.mxu0 0.0
    %72 = vmatpush.msra.mxu0 %v50
    %73 = vmatmul.f32.gmra.mxu0 %v55
    %v74 = vpop.f32.mrf.mxu0
    %v75 = vadd.f32 0.0, %v74
    %76 = vdwg.mxu0
    %77 = vmatpush.msra.mxu0 0.0
    %78 = vmatpush.msra.mxu0 0.0
    %79 = vmatpush.msra.mxu0 0.0
    %80 = vmatpush.msra.mxu0 0.0
    %81 = vmatpush.msra.mxu0 0.0
    %82 = vmatpush.msra.mxu0 0.0
    %83 = vmatpush.msra.mxu0 0.0
    %84 = vmatpush.msra.mxu0 0.0
    %85 = vmatpush.msra.mxu0 0.0
    %86 = vmatpush.msra.mxu0 0.0
    %87 = vmatpush.msra.mxu0 0.0
    %88 = vmatpush.msra.mxu0 0.0
    %89 = vmatpush.msra.mxu0 0.0
    %90 = vmatpush.msra.mxu0 0.0
    %91 = vmatpush.msra.mxu0 0.0
    %92 = vmatpush.msra.mxu0 %v51
    %93 = vmatmul.f32.gmra.mxu0 %v55
    %v94 = vpop.f32.mrf.mxu0
    %v95 = vadd.f32 0.0, %v94
    %96 = vdwg.mxu0
    %v97 = vadd.f32 %v75, %v95
    %98 = vadd.xlane.f32.xlu0 %v97
    %v99 = vpop.xlane.xlu0 %98
    %v100 = vmul.f32 %v99, 0.001953125
    %v101 = vsub.f32 %v50, %v100
    %v102 = vsub.f32 %v51, %v100
    %v103 = vmul.f32 %v101, %v101
    %v104 = vmul.f32 %v102, %v102
    %105 = vmatpush.msra.mxu0 0.0
    %106 = vmatpush.msra.mxu0 0.0
    %107 = vmatpush.msra.mxu0 0.0
    %108 = vmatpush.msra.mxu0 0.0
    %109 = vmatpush.msra.mxu0 0.0
    %110 = vmatpush.msra.mxu0 0.0
    %111 = vmatpush.msra.mxu0 0.0
    %112 = vmatpush.msra.mxu0 0.0
    %113 = vmatpush.msra.mxu0 0.0
    %114 = vmatpush.msra.mxu0 0.0
    %115 = vmatpush.msra.mxu0 0.0
    %116 = vmatpush.msra.mxu0 0.0
    %117 = vmatpush.msra.mxu0 0.0
    %118 = vmatpush.msra.mxu0 0.0
    %119 = vmatpush.msra.mxu0 0.0
    %120 = vmatpush.msra.mxu0 %v103
    %121 = vmatmul.f32.gmra.mxu0 %v55
    %v122 = vpop.f32.mrf.mxu0
    %v123 = vadd.f32 0.0, %v122
    %124 = vdwg.mxu0
    %125 = vmatpush.msra.mxu0 0.0
    %126 = vmatpush.msra.mxu0 0.0
    %127 = vmatpush.msra.mxu0 0.0
    %128 = vmatpush.msra.mxu0 0.0
    %129 = vmatpush.msra.mxu0 0.0
    %130 = vmatpush.msra.mxu0 0.0
    %131 = vmatpush.msra.mxu0 0.0
    %132 = vmatpush.msra.mxu0 0.0
    %133 = vmatpush.msra.mxu0 0.0
    %134 = vmatpush.msra.mxu0 0.0
    %135 = vmatpush.msra.mxu0 0.0
    %136 = vmatpush.msra.mxu0 0.0
    %137 = vmatpush.msra.mxu0 0.0
    %138 = vmatpush.msra.mxu0 0.0
    %139 = vmatpush.msra.mxu0 0.0
    %140 = vmatpush.msra.mxu0 %v104
    %141 = vmatmul.f32.gmra.mxu0 %v55
    %v142 = vpop.f32.mrf.mxu0
    %v143 = vadd.f32 0.0, %v142
    %144 = vdwg.mxu0
    %v145 = vadd.f32 %v123, %v143
    %146 = vadd.xlane.f32.xlu0 %v145
    %v147 = vpop.xlane.xlu0 %146
    %v148 = vmul.f32 %v147, 0.001953125
    %v149 = vadd.f32 %v148, 1e-05
    %v150 = vrsqrt.pop %v149
    %v151 = vmul.f32 %v150, %v149
    %v152 = vmul.f32 %v151, %v150
    %v153 = vmul.f32 0.5, %v152
    %v154 = vsub.f32 1.5, %v153
    %v155 = vmul.f32 %v150, %v154
    %vm156 = vweird.f32 %v149
    %vm157 = vweird.f32 %v150
    %vm158 = vmor %vm156, %vm157
    %v159 = vsel %vm158, %v150, %v155
    %v160 = vmul.f32 %v101, %v159
    %v161 = vmul.f32 %v102, %v159
    %162 = vrot.lane.b32.xlu0 %v160, 17
    %v163 = vpop.permute.xlu0 %162
    %164 = vrot.lane.b32.xlu0 %v161, 17
    %v165 = vpop.permute.xlu0 %164
    %v166 = vlaneseq
    %v167 = vand.u32 %v166, 127
    %vm168 = vcmp.lt.s32.totalorder %v167, 17
    %v169 = vsel %vm168, %v163, %v165
    %v170 = vsel %vm168, %v165, %v163
    %v171 = vld [vmem:[%s3] sm:$0xff]
    %v172 = vld [vmem:[%s3 + $0x8] sm:$0xff]
    %v173 = vmul.f32 %v170, %v171
    %v174 = vmul.f32 %v169, %v172
    %175 = vst [vmem:[#allocation2] sm:$0xff] %v173
    %176 = vst [vmem:[#allocation2 + $0x8] sm:$0xff] %v174
    %177 = vrot.lane.b32.xlu0 %v160, 16
    %v178 = vpop.permute.xlu0 %177
    %179 = vrot.lane.b32.xlu0 %v161, 16
    %v180 = vpop.permute.xlu0 %179
    %vm181 = vcmp.lt.s32.totalorder %v167, 16
    %v182 = vsel %vm181, %v178, %v180
    %v183 = vsel %vm181, %v180, %v178
    %v184 = vld [vmem:[%s3 + $0x10] sm:$0xff]
    %v185 = vld [vmem:[%s3 + $0x18] sm:$0xff]
    %v186 = vmul.f32 %v183, %v184
    %v187 = vmul.f32 %v182, %v185
    %188 = vst [vmem:[#allocation2 + $0x10] sm:$0xff] %v186
    %189 = vst [vmem:[#allocation2 + $0x18] sm:$0xff] %v187
    %190 = vrot.lane.b32.xlu0 %v160, 15
    %v191 = vpop.permute.xlu0 %190
    %192 = vrot.lane.b32.xlu0 %v161, 15
    %v193 = vpop.permute.xlu0 %192
    %vm194 = vcmp.lt.s32.totalorder %v167, 15
    %v195 = vsel %vm194, %v191, %v193
    %v196 = vsel %vm194, %v193, %v191
    %v197 = vld [vmem:[%s3 + $0x20] sm:$0xff]
    %v198 = vld [vmem:[%s3 + $0x28] sm:$0xff]
    %v199 = vmul.f32 %v196, %v197
    %v200 = vmul.f32 %v195, %v198
    %201 = vst [vmem:[#allocation2 + $0x20] sm:$0xff] %v199
    %202 = vst [vmem:[#allocation2 + $0x28] sm:$0xff] %v200
    %203 = vrot.lane.b32.xlu0 %v160, 1
    %v204 = vpop.permute.xlu0 %203
    %205 = vrot.lane.b32.xlu0 %v161, 1
    %v206 = vpop.permute.xlu0 %205
    %vm207 = vcmp.lt.s32.totalorder %v167, 1
    %v208 = vsel %vm207, %v204, %v206
    %v209 = vsel %vm207, %v206, %v204
    %v210 = vld [vmem:[%s3 + $0x30] sm:$0xff]
    %v211 = vld [vmem:[%s3 + $0x38] sm:$0xff]
    %v212 = vmul.f32 %v209, %v210
    %v213 = vmul.f32 %v208, %v211
    %214 = vst [vmem:[#allocation2 + $0x30] sm:$0xff] %v212
    %215 = vst [vmem:[#allocation2 + $0x38] sm:$0xff] %v213
    %216 = vst [vmem:[#allocation2 + $0x40] sm:$0xff] %v160
    %217 = vst [vmem:[#allocation2 + $0x48] sm:$0xff] %v161
    %218 = vrot.lane.b32.xlu0 %v160, 127
    %v219 = vpop.permute.xlu0 %218
    %220 = vrot.lane.b32.xlu0 %v161, 127
    %v221 = vpop.permute.xlu0 %220
    %vm222 = vcmp.lt.s32.totalorder %v167, 127
    %v223 = vsel %vm222, %v219, %v221
    %v224 = vsel %vm222, %v221, %v219
    %v225 = vld [vmem:[%s3 + $0x50] sm:$0xff]
    %v226 = vld [vmem:[%s3 + $0x58] sm:$0xff]
    %v227 = vmul.f32 %v223, %v225
    %v228 = vmul.f32 %v224, %v226
    %229 = vst [vmem:[#allocation2 + $0x50] sm:$0xff] %v227
    %230 = vst [vmem:[#allocation2 + $0x58] sm:$0xff] %v228
    %231 = vrot.lane.b32.xlu0 %v160, 113
    %v232 = vpop.permute.xlu0 %231
    %233 = vrot.lane.b32.xlu0 %v161, 113
    %v234 = vpop.permute.xlu0 %233
    %vm235 = vcmp.lt.s32.totalorder %v167, 113
    %v236 = vsel %vm235, %v232, %v234
    %v237 = vsel %vm235, %v234, %v232
    %v238 = vld [vmem:[%s3 + $0x60] sm:$0xff]
    %v239 = vld [vmem:[%s3 + $0x68] sm:$0xff]
    %v240 = vmul.f32 %v236, %v238
    %v241 = vmul.f32 %v237, %v239
    %242 = vst [vmem:[#allocation2 + $0x60] sm:$0xff] %v240
    %243 = vst [vmem:[#allocation2 + $0x68] sm:$0xff] %v241
    %244 = vrot.lane.b32.xlu0 %v160, 112
    %v245 = vpop.permute.xlu0 %244
    %246 = vrot.lane.b32.xlu0 %v161, 112
    %v247 = vpop.permute.xlu0 %246
    %vm248 = vcmp.lt.s32.totalorder %v167, 112
    %v249 = vsel %vm248, %v245, %v247
    %v250 = vsel %vm248, %v247, %v245
    %v251 = vld [vmem:[%s3 + $0x70] sm:$0xff]
    %v252 = vld [vmem:[%s3 + $0x78] sm:$0xff]
    %v253 = vmul.f32 %v249, %v251
    %v254 = vmul.f32 %v250, %v252
    %255 = vst [vmem:[#allocation2 + $0x70] sm:$0xff] %v253
    %256 = vst [vmem:[#allocation2 + $0x78] sm:$0xff] %v254
    %257 = vrot.lane.b32.xlu0 %v160, 111
    %v258 = vpop.permute.xlu0 %257
    %259 = vrot.lane.b32.xlu0 %v161, 111
    %v260 = vpop.permute.xlu0 %259
    %vm261 = vcmp.lt.s32.totalorder %v167, 111
    %v262 = vsel %vm261, %v258, %v260
    %v263 = vsel %vm261, %v260, %v258
    %v264 = vld [vmem:[%s3 + $0x80] sm:$0xff]
    %v265 = vld [vmem:[%s3 + $0x88] sm:$0xff]
    %v266 = vmul.f32 %v262, %v264
    %v267 = vmul.f32 %v263, %v265
    %268 = vst [vmem:[#allocation2 + $0x80] sm:$0xff] %v266
    %269 = vst [vmem:[#allocation2 + $0x88] sm:$0xff] %v267
    %v270 = vld [vmem:[%s1] sm:$0xff]
    %v271 = vld [vmem:[%s1 + $0x8] sm:$0xff]
    %v272 = vld [vmem:[%s1 + $0x10] sm:$0xff]
    %v273 = vld [vmem:[#allocation2] sm:$0xff]
    %v274 = vld [vmem:[#allocation2 + $0x8] sm:$0xff]
    %v275 = vld [vmem:[#allocation2 + $0x10] sm:$0xff]
    %v276 = vld [vmem:[#allocation2 + $0x18] sm:$0xff]
    %v277 = vld [vmem:[#allocation2 + $0x20] sm:$0xff]
    %v278 = vld [vmem:[#allocation2 + $0x28] sm:$0xff]
    %v279 = vld [vmem:[#allocation2 + $0x30] sm:$0xff]
    %v280 = vld [vmem:[#allocation2 + $0x38] sm:$0xff]
    %v281 = vld [vmem:[#allocation2 + $0x40] sm:$0xff]
    %v282 = vld [vmem:[#allocation2 + $0x48] sm:$0xff]
    %v283 = vld [vmem:[#allocation2 + $0x50] sm:$0xff]
    %v284 = vld [vmem:[#allocation2 + $0x58] sm:$0xff]
    %v285 = vld [vmem:[#allocation2 + $0x60] sm:$0xff]
    %v286 = vld [vmem:[#allocation2 + $0x68] sm:$0xff]
    %v287 = vld [vmem:[#allocation2 + $0x70] sm:$0xff]
    %v288 = vld [vmem:[#allocation2 + $0x78] sm:$0xff]
    %v289 = vld [vmem:[#allocation2 + $0x80] sm:$0xff]
    %v290 = vld [vmem:[#allocation2 + $0x88] sm:$0xff]
    %v291 = vld [vmem:[%s2] sm:$0xff]
    %v292 = vld [vmem:[%s2 + $0x8] sm:$0xff]
    %v293 = vld [vmem:[%s2 + $0x10] sm:$0xff]
    %295 = vset.pattern.permute.xlu0 0
    %296 = vperm.xlu0 %295, %v291
    %v297 = vpop.permute.xlu0 %296
    %300 = vset.pattern.permute.xlu0 0
    %301 = vperm.xlu0 %300, %v292
    %v302 = vpop.permute.xlu0 %301
    %305 = vset.pattern.permute.xlu0 0
    %306 = vperm.xlu0 %305, %v293
    %v307 = vpop.permute.xlu0 %306
    %vm309 = vcmask 588800
    %v311 = vsel %vm309, %v270, 0
    %v314 = vsel %vm309, %v271, 0
    %v317 = vsel %vm309, %v272, 0
    %319 = vmatpush.msra.mxu0 0.0
    %320 = vmatpush.msra.mxu0 0.0
    %321 = vmatpush.msra.mxu0 0.0
    %322 = vmatpush.msra.mxu0 0.0
    %323 = vmatpush.msra.mxu0 0.0
    %324 = vmatpush.msra.mxu0 0.0
    %325 = vmatpush.msra.mxu0 0.0
    %326 = vmatpush.msra.mxu0 %v289
    %327 = vmatpush.msra.mxu0 %v287
    %328 = vmatpush.msra.mxu0 %v285
    %329 = vmatpush.msra.mxu0 %v283
    %330 = vmatpush.msra.mxu0 %v281
    %331 = vmatpush.msra.mxu0 %v279
    %332 = vmatpush.msra.mxu0 %v277
    %333 = vmatpush.msra.mxu0 %v275
    %334 = vmatpush.msra.mxu0 %v273
    %335 = vmatmul.f32.gmra.mxu0 %v311
    %v336 = vpop.f32.mrf.mxu0
    %v337 = vadd.f32 %v297, %v336
    %338 = vmatmul.f32.gmra.mxu0 %v314
    %v339 = vpop.f32.mrf.mxu0
    %v340 = vadd.f32 %v302, %v339
    %341 = vmatmul.f32.gmra.mxu0 %v317
    %v342 = vpop.f32.mrf.mxu0
    %v343 = vadd.f32 %v307, %v342
    %344 = vdwg.mxu0
    %345 = vmatpush.msra.mxu0 0.0
    %346 = vmatpush.msra.mxu0 0.0
    %347 = vmatpush.msra.mxu0 0.0
    %348 = vmatpush.msra.mxu0 0.0
    %349 = vmatpush.msra.mxu0 0.0
    %350 = vmatpush.msra.mxu0 0.0
    %351 = vmatpush.msra.mxu0 0.0
    %352 = vmatpush.msra.mxu0 %v290
    %353 = vmatpush.msra.mxu0 %v288
    %354 = vmatpush.msra.mxu0 %v286
    %355 = vmatpush.msra.mxu0 %v284
    %356 = vmatpush.msra.mxu0 %v282
    %357 = vmatpush.msra.mxu0 %v280
    %358 = vmatpush.msra.mxu0 %v278
    %359 = vmatpush.msra.mxu0 %v276
    %360 = vmatpush.msra.mxu0 %v274
    %361 = vmatmul.f32.gmra.mxu0 %v311
    %v362 = vpop.f32.mrf.mxu0
    %v363 = vadd.f32 %v297, %v362
    %364 = vmatmul.f32.gmra.mxu0 %v314
    %v365 = vpop.f32.mrf.mxu0
    %v366 = vadd.f32 %v302, %v365
    %367 = vmatmul.f32.gmra.mxu0 %v317
    %v368 = vpop.f32.mrf.mxu0
    %v369 = vadd.f32 %v307, %v368
    %370 = vdwg.mxu0
    %v371 = vmax.f32 %v337, 0.0
    %v372 = vmax.f32 %v363, 0.0
    %373 = vmatpush.msra.mxu0 0.0
    %374 = vmatpush.msra.mxu0 0.0
    %375 = vmatpush.msra.mxu0 0.0
    %376 = vmatpush.msra.mxu0 0.0
    %377 = vmatpush.msra.mxu0 0.0
    %378 = vmatpush.msra.mxu0 0.0
    %379 = vmatpush.msra.mxu0 0.0
    %380 = vmatpush.msra.mxu0 0.0
    %381 = vmatpush.msra.mxu0 0.0
    %382 = vmatpush.msra.mxu0 0.0
    %383 = vmatpush.msra.mxu0 0.0
    %384 = vmatpush.msra.mxu0 0.0
    %385 = vmatpush.msra.mxu0 0.0
    %386 = vmatpush.msra.mxu0 0.0
    %387 = vmatpush.msra.mxu0 0.0
    %388 = vmatpush.msra.mxu0 %v371
    %389 = vmatmul.f32.gmra.mxu0 %v55
    %v390 = vpop.f32.mrf.mxu0
    %v391 = vadd.f32 0.0, %v390
    %392 = vdwg.mxu0
    %393 = vmatpush.msra.mxu0 0.0
    %394 = vmatpush.msra.mxu0 0.0
    %395 = vmatpush.msra.mxu0 0.0
    %396 = vmatpush.msra.mxu0 0.0
    %397 = vmatpush.msra.mxu0 0.0
    %398 = vmatpush.msra.mxu0 0.0
    %399 = vmatpush.msra.mxu0 0.0
    %400 = vmatpush.msra.mxu0 0.0
    %401 = vmatpush.msra.mxu0 0.0
    %402 = vmatpush.msra.mxu0 0.0
    %403 = vmatpush.msra.mxu0 0.0
    %404 = vmatpush.msra.mxu0 0.0
    %405 = vmatpush.msra.mxu0 0.0
    %406 = vmatpush.msra.mxu0 0.0
    %407 = vmatpush.msra.mxu0 0.0
    %408 = vmatpush.msra.mxu0 %v372
    %409 = vmatmul.f32.gmra.mxu0 %v55
    %v410 = vpop.f32.mrf.mxu0
    %v411 = vadd.f32 0.0, %v410
    %412 = vdwg.mxu0
    %v413 = vadd.f32 %v391, %v411
    %414 = vadd.xlane.f32.xlu0 %v413
    %v415 = vpop.xlane.xlu0 %414
    %v416 = vmul.f32 %v415, 0.001953125
    %v417 = vsub.f32 %v371, %v416
    %v418 = vsub.f32 %v372, %v416
    %v419 = vmul.f32 %v417, %v417
    %v420 = vmul.f32 %v418, %v418
    %421 = vmatpush.msra.mxu0 0.0
    %422 = vmatpush.msra.mxu0 0.0
    %423 = vmatpush.msra.mxu0 0.0
    %424 = vmatpush.msra.mxu0 0.0
    %425 = vmatpush.msra.mxu0 0.0
    %426 = vmatpush.msra.mxu0 0.0
    %427 = vmatpush.msra.mxu0 0.0
    %428 = vmatpush.msra.mxu0 0.0
    %429 = vmatpush.msra.mxu0 0.0
    %430 = vmatpush.msra.mxu0 0.0
    %431 = vmatpush.msra.mxu0 0.0
    %432 = vmatpush.msra.mxu0 0.0
    %433 = vmatpush.msra.mxu0 0.0
    %434 = vmatpush.msra.mxu0 0.0
    %435 = vmatpush.msra.mxu0 0.0
    %436 = vmatpush.msra.mxu0 %v419
    %437 = vmatmul.f32.gmra.mxu0 %v55
    %v438 = vpop.f32.mrf.mxu0
    %v439 = vadd.f32 0.0, %v438
    %440 = vdwg.mxu0
    %441 = vmatpush.msra.mxu0 0.0
    %442 = vmatpush.msra.mxu0 0.0
    %443 = vmatpush.msra.mxu0 0.0
    %444 = vmatpush.msra.mxu0 0.0
    %445 = vmatpush.msra.mxu0 0.0
    %446 = vmatpush.msra.mxu0 0.0
    %447 = vmatpush.msra.mxu0 0.0
    %448 = vmatpush.msra.mxu0 0.0
    %449 = vmatpush.msra.mxu0 0.0
    %450 = vmatpush.msra.mxu0 0.0
    %451 = vmatpush.msra.mxu0 0.0
    %452 = vmatpush.msra.mxu0 0.0
    %453 = vmatpush.msra.mxu0 0.0
    %454 = vmatpush.msra.mxu0 0.0
    %455 = vmatpush.msra.mxu0 0.0
    %456 = vmatpush.msra.mxu0 %v420
    %457 = vmatmul.f32.gmra.mxu0 %v55
    %v458 = vpop.f32.mrf.mxu0
    %v459 = vadd.f32 0.0, %v458
    %460 = vdwg.mxu0
    %v461 = vadd.f32 %v439, %v459
    %462 = vadd.xlane.f32.xlu0 %v461
    %v463 = vpop.xlane.xlu0 %462
    %v464 = vmul.f32 %v463, 0.001953125
    %v465 = vadd.f32 %v464, 1e-05
    %v466 = vrsqrt.pop %v465
    %v467 = vmul.f32 %v466, %v465
    %v468 = vmul.f32 %v467, %v466
    %v469 = vmul.f32 0.5, %v468
    %v470 = vsub.f32 1.5, %v469
    %v471 = vmul.f32 %v466, %v470
    %vm472 = vweird.f32 %v465
    %vm473 = vweird.f32 %v466
    %vm474 = vmor %vm472, %vm473
    %v475 = vsel %vm474, %v466, %v471
    %v476 = vmul.f32 %v417, %v475
    %v477 = vmul.f32 %v418, %v475
    %478 = vrot.lane.b32.xlu0 %v476, 17
    %v479 = vpop.permute.xlu0 %478
    %480 = vrot.lane.b32.xlu0 %v477, 17
    %v481 = vpop.permute.xlu0 %480
    %v482 = vsel %vm168, %v479, %v481
    %v483 = vsel %vm168, %v481, %v479
    %v484 = vld [vmem:[%s3] sm:$0xff]
    %v485 = vld [vmem:[%s3 + $0x8] sm:$0xff]
    %v486 = vmul.f32 %v483, %v484
    %v487 = vmul.f32 %v482, %v485
    %488 = vst [vmem:[#allocation2] sm:$0xff] %v486
    %489 = vst [vmem:[#allocation2 + $0x8] sm:$0xff] %v487
    %490 = vrot.lane.b32.xlu0 %v476, 16
    %v491 = vpop.permute.xlu0 %490
    %492 = vrot.lane.b32.xlu0 %v477, 16
    %v493 = vpop.permute.xlu0 %492
    %v494 = vsel %vm181, %v491, %v493
    %v495 = vsel %vm181, %v493, %v491
    %v496 = vld [vmem:[%s3 + $0x10] sm:$0xff]
    %v497 = vld [vmem:[%s3 + $0x18] sm:$0xff]
    %v498 = vmul.f32 %v495, %v496
    %v499 = vmul.f32 %v494, %v497
    %500 = vst [vmem:[#allocation2 + $0x10] sm:$0xff] %v498
    %501 = vst [vmem:[#allocation2 + $0x18] sm:$0xff] %v499
    %502 = vrot.lane.b32.xlu0 %v476, 15
    %v503 = vpop.permute.xlu0 %502
    %504 = vrot.lane.b32.xlu0 %v477, 15
    %v505 = vpop.permute.xlu0 %504
    %v506 = vsel %vm194, %v503, %v505
    %v507 = vsel %vm194, %v505, %v503
    %v508 = vld [vmem:[%s3 + $0x20] sm:$0xff]
    %v509 = vld [vmem:[%s3 + $0x28] sm:$0xff]
    %v510 = vmul.f32 %v507, %v508
    %v511 = vmul.f32 %v506, %v509
    %512 = vst [vmem:[#allocation2 + $0x20] sm:$0xff] %v510
    %513 = vst [vmem:[#allocation2 + $0x28] sm:$0xff] %v511
    %514 = vrot.lane.b32.xlu0 %v476, 1
    %v515 = vpop.permute.xlu0 %514
    %516 = vrot.lane.b32.xlu0 %v477, 1
    %v517 = vpop.permute.xlu0 %516
    %v518 = vsel %vm207, %v515, %v517
    %v519 = vsel %vm207, %v517, %v515
    %v520 = vld [vmem:[%s3 + $0x30] sm:$0xff]
    %v521 = vld [vmem:[%s3 + $0x38] sm:$0xff]
    %v522 = vmul.f32 %v519, %v520
    %v523 = vmul.f32 %v518, %v521
    %524 = vst [vmem:[#allocation2 + $0x30] sm:$0xff] %v522
    %525 = vst [vmem:[#allocation2 + $0x38] sm:$0xff] %v523
    %526 = vst [vmem:[#allocation2 + $0x40] sm:$0xff] %v476
    %527 = vst [vmem:[#allocation2 + $0x48] sm:$0xff] %v477
    %528 = vrot.lane.b32.xlu0 %v476, 127
    %v529 = vpop.permute.xlu0 %528
    %530 = vrot.lane.b32.xlu0 %v477, 127
    %v531 = vpop.permute.xlu0 %530
    %v532 = vsel %vm222, %v529, %v531
    %v533 = vsel %vm222, %v531, %v529
    %v534 = vld [vmem:[%s3 + $0x50] sm:$0xff]
    %v535 = vld [vmem:[%s3 + $0x58] sm:$0xff]
    %v536 = vmul.f32 %v532, %v534
    %v537 = vmul.f32 %v533, %v535
    %538 = vst [vmem:[#allocation2 + $0x50] sm:$0xff] %v536
    %539 = vst [vmem:[#allocation2 + $0x58] sm:$0xff] %v537
    %540 = vrot.lane.b32.xlu0 %v476, 113
    %v541 = vpop.permute.xlu0 %540
    %542 = vrot.lane.b32.xlu0 %v477, 113
    %v543 = vpop.permute.xlu0 %542
    %v544 = vsel %vm235, %v541, %v543
    %v545 = vsel %vm235, %v543, %v541
    %v546 = vld [vmem:[%s3 + $0x60] sm:$0xff]
    %v547 = vld [vmem:[%s3 + $0x68] sm:$0xff]
    %v548 = vmul.f32 %v544, %v546
    %v549 = vmul.f32 %v545, %v547
    %550 = vst [vmem:[#allocation2 + $0x60] sm:$0xff] %v548
    %551 = vst [vmem:[#allocation2 + $0x68] sm:$0xff] %v549
    %552 = vrot.lane.b32.xlu0 %v476, 112
    %v553 = vpop.permute.xlu0 %552
    %554 = vrot.lane.b32.xlu0 %v477, 112
    %v555 = vpop.permute.xlu0 %554
    %v556 = vsel %vm248, %v553, %v555
    %v557 = vsel %vm248, %v555, %v553
    %v558 = vld [vmem:[%s3 + $0x70] sm:$0xff]
    %v559 = vld [vmem:[%s3 + $0x78] sm:$0xff]
    %v560 = vmul.f32 %v556, %v558
    %v561 = vmul.f32 %v557, %v559
    %562 = vst [vmem:[#allocation2 + $0x70] sm:$0xff] %v560
    %563 = vst [vmem:[#allocation2 + $0x78] sm:$0xff] %v561
    %564 = vrot.lane.b32.xlu0 %v476, 111
    %v565 = vpop.permute.xlu0 %564
    %566 = vrot.lane.b32.xlu0 %v477, 111
    %v567 = vpop.permute.xlu0 %566
    %v568 = vsel %vm261, %v565, %v567
    %v569 = vsel %vm261, %v567, %v565
    %v570 = vld [vmem:[%s3 + $0x80] sm:$0xff]
    %v571 = vld [vmem:[%s3 + $0x88] sm:$0xff]
    %v572 = vmul.f32 %v568, %v570
    %v573 = vmul.f32 %v569, %v571
    %574 = vst [vmem:[#allocation2 + $0x80] sm:$0xff] %v572
    %575 = vst [vmem:[#allocation2 + $0x88] sm:$0xff] %v573
    %v576 = vld [vmem:[%s1 + $0x8] sm:$0xff]
    %v577 = vld [vmem:[#allocation2] sm:$0xff]
    %v578 = vld [vmem:[#allocation2 + $0x8] sm:$0xff]
    %v579 = vld [vmem:[#allocation2 + $0x10] sm:$0xff]
    %v580 = vld [vmem:[#allocation2 + $0x18] sm:$0xff]
    %v581 = vld [vmem:[#allocation2 + $0x20] sm:$0xff]
    %v582 = vld [vmem:[#allocation2 + $0x28] sm:$0xff]
    %v583 = vld [vmem:[#allocation2 + $0x30] sm:$0xff]
    %v584 = vld [vmem:[#allocation2 + $0x38] sm:$0xff]
    %v585 = vld [vmem:[#allocation2 + $0x40] sm:$0xff]
    %v586 = vld [vmem:[#allocation2 + $0x48] sm:$0xff]
    %v587 = vld [vmem:[#allocation2 + $0x50] sm:$0xff]
    %v588 = vld [vmem:[#allocation2 + $0x58] sm:$0xff]
    %v589 = vld [vmem:[#allocation2 + $0x60] sm:$0xff]
    %v590 = vld [vmem:[#allocation2 + $0x68] sm:$0xff]
    %v591 = vld [vmem:[#allocation2 + $0x70] sm:$0xff]
    %v592 = vld [vmem:[#allocation2 + $0x78] sm:$0xff]
    %v593 = vld [vmem:[#allocation2 + $0x80] sm:$0xff]
    %v594 = vld [vmem:[#allocation2 + $0x88] sm:$0xff]
    %v596 = vsel %vm309, %v576, 0
    %598 = vmatpush.msra.mxu0 0.0
    %599 = vmatpush.msra.mxu0 0.0
    %600 = vmatpush.msra.mxu0 0.0
    %601 = vmatpush.msra.mxu0 0.0
    %602 = vmatpush.msra.mxu0 0.0
    %603 = vmatpush.msra.mxu0 0.0
    %604 = vmatpush.msra.mxu0 0.0
    %605 = vmatpush.msra.mxu0 %v593
    %606 = vmatpush.msra.mxu0 %v591
    %607 = vmatpush.msra.mxu0 %v589
    %608 = vmatpush.msra.mxu0 %v587
    %609 = vmatpush.msra.mxu0 %v585
    %610 = vmatpush.msra.mxu0 %v583
    %611 = vmatpush.msra.mxu0 %v581
    %612 = vmatpush.msra.mxu0 %v579
    %613 = vmatpush.msra.mxu0 %v577
    %614 = vmatmul.f32.gmra.mxu0 %v596
    %v615 = vpop.f32.mrf.mxu0
    %v616 = vadd.f32 0.0, %v615
    %617 = vdwg.mxu0
    %618 = vmatpush.msra.mxu0 0.0
    %619 = vmatpush.msra.mxu0 0.0
    %620 = vmatpush.msra.mxu0 0.0
    %621 = vmatpush.msra.mxu0 0.0
    %622 = vmatpush.msra.mxu0 0.0
    %623 = vmatpush.msra.mxu0 0.0
    %624 = vmatpush.msra.mxu0 0.0
    %625 = vmatpush.msra.mxu0 %v594
    %626 = vmatpush.msra.mxu0 %v592
    %627 = vmatpush.msra.mxu0 %v590
    %628 = vmatpush.msra.mxu0 %v588
    %629 = vmatpush.msra.mxu0 %v586
    %630 = vmatpush.msra.mxu0 %v584
    %631 = vmatpush.msra.mxu0 %v582
    %632 = vmatpush.msra.mxu0 %v580
    %633 = vmatpush.msra.mxu0 %v578
    %634 = vmatmul.f32.gmra.mxu0 %v596
    %v635 = vpop.f32.mrf.mxu0
    %v636 = vadd.f32 0.0, %v635
    %637 = vdwg.mxu0
    %s638 = sld [smem:[#allocation3]]
    %v639 = vstv %s638
    %v640 = vmul.f32 %v639, %v616
    %v641 = vmul.f32 %v639, %v636
    %v642 = vadd.f32 %v340, %v640
    %v643 = vadd.f32 %v366, %v641
    %v644 = vmax.f32 %v642, 0.0
    %v645 = vmax.f32 %v643, 0.0
    %646 = vmatpush.msra.mxu0 0.0
    %647 = vmatpush.msra.mxu0 0.0
    %648 = vmatpush.msra.mxu0 0.0
    %649 = vmatpush.msra.mxu0 0.0
    %650 = vmatpush.msra.mxu0 0.0
    %651 = vmatpush.msra.mxu0 0.0
    %652 = vmatpush.msra.mxu0 0.0
    %653 = vmatpush.msra.mxu0 0.0
    %654 = vmatpush.msra.mxu0 0.0
    %655 = vmatpush.msra.mxu0 0.0
    %656 = vmatpush.msra.mxu0 0.0
    %657 = vmatpush.msra.mxu0 0.0
    %658 = vmatpush.msra.mxu0 0.0
    %659 = vmatpush.msra.mxu0 0.0
    %660 = vmatpush.msra.mxu0 0.0
    %661 = vmatpush.msra.mxu0 %v644
    %662 = vmatmul.f32.gmra.mxu0 %v55
    %v663 = vpop.f32.mrf.mxu0
    %v664 = vadd.f32 0.0, %v663
    %665 = vdwg.mxu0
    %666 = vmatpush.msra.mxu0 0.0
    %667 = vmatpush.msra.mxu0 0.0
    %668 = vmatpush.msra.mxu0 0.0
    %669 = vmatpush.msra.mxu0 0.0
    %670 = vmatpush.msra.mxu0 0.0
    %671 = vmatpush.msra.mxu0 0.0
    %672 = vmatpush.msra.mxu0 0.0
    %673 = vmatpush.msra.mxu0 0.0
    %674 = vmatpush.msra.mxu0 0.0
    %675 = vmatpush.msra.mxu0 0.0
    %676 = vmatpush.msra.mxu0 0.0
    %677 = vmatpush.msra.mxu0 0.0
    %678 = vmatpush.msra.mxu0 0.0
    %679 = vmatpush.msra.mxu0 0.0
    %680 = vmatpush.msra.mxu0 0.0
    %681 = vmatpush.msra.mxu0 %v645
    %682 = vmatmul.f32.gmra.mxu0 %v55
    %v683 = vpop.f32.mrf.mxu0
    %v684 = vadd.f32 0.0, %v683
    %685 = vdwg.mxu0
    %v686 = vadd.f32 %v664, %v684
    %687 = vadd.xlane.f32.xlu0 %v686
    %v688 = vpop.xlane.xlu0 %687
    %v689 = vmul.f32 %v688, 0.001953125
    %v690 = vsub.f32 %v644, %v689
    %v691 = vsub.f32 %v645, %v689
    %v692 = vmul.f32 %v690, %v690
    %v693 = vmul.f32 %v691, %v691
    %694 = vmatpush.msra.mxu0 0.0
    %695 = vmatpush.msra.mxu0 0.0
    %696 = vmatpush.msra.mxu0 0.0
    %697 = vmatpush.msra.mxu0 0.0
    %698 = vmatpush.msra.mxu0 0.0
    %699 = vmatpush.msra.mxu0 0.0
    %700 = vmatpush.msra.mxu0 0.0
    %701 = vmatpush.msra.mxu0 0.0
    %702 = vmatpush.msra.mxu0 0.0
    %703 = vmatpush.msra.mxu0 0.0
    %704 = vmatpush.msra.mxu0 0.0
    %705 = vmatpush.msra.mxu0 0.0
    %706 = vmatpush.msra.mxu0 0.0
    %707 = vmatpush.msra.mxu0 0.0
    %708 = vmatpush.msra.mxu0 0.0
    %709 = vmatpush.msra.mxu0 %v692
    %710 = vmatmul.f32.gmra.mxu0 %v55
    %v711 = vpop.f32.mrf.mxu0
    %v712 = vadd.f32 0.0, %v711
    %713 = vdwg.mxu0
    %714 = vmatpush.msra.mxu0 0.0
    %715 = vmatpush.msra.mxu0 0.0
    %716 = vmatpush.msra.mxu0 0.0
    %717 = vmatpush.msra.mxu0 0.0
    %718 = vmatpush.msra.mxu0 0.0
    %719 = vmatpush.msra.mxu0 0.0
    %720 = vmatpush.msra.mxu0 0.0
    %721 = vmatpush.msra.mxu0 0.0
    %722 = vmatpush.msra.mxu0 0.0
    %723 = vmatpush.msra.mxu0 0.0
    %724 = vmatpush.msra.mxu0 0.0
    %725 = vmatpush.msra.mxu0 0.0
    %726 = vmatpush.msra.mxu0 0.0
    %727 = vmatpush.msra.mxu0 0.0
    %728 = vmatpush.msra.mxu0 0.0
    %729 = vmatpush.msra.mxu0 %v693
    %730 = vmatmul.f32.gmra.mxu0 %v55
    %v731 = vpop.f32.mrf.mxu0
    %v732 = vadd.f32 0.0, %v731
    %733 = vdwg.mxu0
    %v734 = vadd.f32 %v712, %v732
    %735 = vadd.xlane.f32.xlu0 %v734
    %v736 = vpop.xlane.xlu0 %735
    %v737 = vmul.f32 %v736, 0.001953125
    %v738 = vadd.f32 %v737, 1e-05
    %v739 = vrsqrt.pop %v738
    %v740 = vmul.f32 %v739, %v738
    %v741 = vmul.f32 %v740, %v739
    %v742 = vmul.f32 0.5, %v741
    %v743 = vsub.f32 1.5, %v742
    %v744 = vmul.f32 %v739, %v743
    %vm745 = vweird.f32 %v738
    %vm746 = vweird.f32 %v739
    %vm747 = vmor %vm745, %vm746
    %v748 = vsel %vm747, %v739, %v744
    %v749 = vmul.f32 %v690, %v748
    %v750 = vmul.f32 %v691, %v748
    %751 = vrot.lane.b32.xlu0 %v749, 17
    %v752 = vpop.permute.xlu0 %751
    %753 = vrot.lane.b32.xlu0 %v750, 17
    %v754 = vpop.permute.xlu0 %753
    %v755 = vsel %vm168, %v752, %v754
    %v756 = vsel %vm168, %v754, %v752
    %v757 = vld [vmem:[%s3] sm:$0xff]
    %v758 = vld [vmem:[%s3 + $0x8] sm:$0xff]
    %v759 = vmul.f32 %v756, %v757
    %v760 = vmul.f32 %v755, %v758
    %761 = vst [vmem:[#allocation2] sm:$0xff] %v759
    %762 = vst [vmem:[#allocation2 + $0x8] sm:$0xff] %v760
    %763 = vrot.lane.b32.xlu0 %v749, 16
    %v764 = vpop.permute.xlu0 %763
    %765 = vrot.lane.b32.xlu0 %v750, 16
    %v766 = vpop.permute.xlu0 %765
    %v767 = vsel %vm181, %v764, %v766
    %v768 = vsel %vm181, %v766, %v764
    %v769 = vld [vmem:[%s3 + $0x10] sm:$0xff]
    %v770 = vld [vmem:[%s3 + $0x18] sm:$0xff]
    %v771 = vmul.f32 %v768, %v769
    %v772 = vmul.f32 %v767, %v770
    %773 = vst [vmem:[#allocation2 + $0x10] sm:$0xff] %v771
    %774 = vst [vmem:[#allocation2 + $0x18] sm:$0xff] %v772
    %775 = vrot.lane.b32.xlu0 %v749, 15
    %v776 = vpop.permute.xlu0 %775
    %777 = vrot.lane.b32.xlu0 %v750, 15
    %v778 = vpop.permute.xlu0 %777
    %v779 = vsel %vm194, %v776, %v778
    %v780 = vsel %vm194, %v778, %v776
    %v781 = vld [vmem:[%s3 + $0x20] sm:$0xff]
    %v782 = vld [vmem:[%s3 + $0x28] sm:$0xff]
    %v783 = vmul.f32 %v780, %v781
    %v784 = vmul.f32 %v779, %v782
    %785 = vst [vmem:[#allocation2 + $0x20] sm:$0xff] %v783
    %786 = vst [vmem:[#allocation2 + $0x28] sm:$0xff] %v784
    %787 = vrot.lane.b32.xlu0 %v749, 1
    %v788 = vpop.permute.xlu0 %787
    %789 = vrot.lane.b32.xlu0 %v750, 1
    %v790 = vpop.permute.xlu0 %789
    %v791 = vsel %vm207, %v788, %v790
    %v792 = vsel %vm207, %v790, %v788
    %v793 = vld [vmem:[%s3 + $0x30] sm:$0xff]
    %v794 = vld [vmem:[%s3 + $0x38] sm:$0xff]
    %v795 = vmul.f32 %v792, %v793
    %v796 = vmul.f32 %v791, %v794
    %797 = vst [vmem:[#allocation2 + $0x30] sm:$0xff] %v795
    %798 = vst [vmem:[#allocation2 + $0x38] sm:$0xff] %v796
    %799 = vst [vmem:[#allocation2 + $0x40] sm:$0xff] %v749
    %800 = vst [vmem:[#allocation2 + $0x48] sm:$0xff] %v750
    %801 = vrot.lane.b32.xlu0 %v749, 127
    %v802 = vpop.permute.xlu0 %801
    %803 = vrot.lane.b32.xlu0 %v750, 127
    %v804 = vpop.permute.xlu0 %803
    %v805 = vsel %vm222, %v802, %v804
    %v806 = vsel %vm222, %v804, %v802
    %v807 = vld [vmem:[%s3 + $0x50] sm:$0xff]
    %v808 = vld [vmem:[%s3 + $0x58] sm:$0xff]
    %v809 = vmul.f32 %v805, %v807
    %v810 = vmul.f32 %v806, %v808
    %811 = vst [vmem:[#allocation2 + $0x50] sm:$0xff] %v809
    %812 = vst [vmem:[#allocation2 + $0x58] sm:$0xff] %v810
    %813 = vrot.lane.b32.xlu0 %v749, 113
    %v814 = vpop.permute.xlu0 %813
    %815 = vrot.lane.b32.xlu0 %v750, 113
    %v816 = vpop.permute.xlu0 %815
    %v817 = vsel %vm235, %v814, %v816
    %v818 = vsel %vm235, %v816, %v814
    %v819 = vld [vmem:[%s3 + $0x60] sm:$0xff]
    %v820 = vld [vmem:[%s3 + $0x68] sm:$0xff]
    %v821 = vmul.f32 %v817, %v819
    %v822 = vmul.f32 %v818, %v820
    %823 = vst [vmem:[#allocation2 + $0x60] sm:$0xff] %v821
    %824 = vst [vmem:[#allocation2 + $0x68] sm:$0xff] %v822
    %825 = vrot.lane.b32.xlu0 %v749, 112
    %v826 = vpop.permute.xlu0 %825
    %827 = vrot.lane.b32.xlu0 %v750, 112
    %v828 = vpop.permute.xlu0 %827
    %v829 = vsel %vm248, %v826, %v828
    %v830 = vsel %vm248, %v828, %v826
    %v831 = vld [vmem:[%s3 + $0x70] sm:$0xff]
    %v832 = vld [vmem:[%s3 + $0x78] sm:$0xff]
    %v833 = vmul.f32 %v829, %v831
    %v834 = vmul.f32 %v830, %v832
    %835 = vst [vmem:[#allocation2 + $0x70] sm:$0xff] %v833
    %836 = vst [vmem:[#allocation2 + $0x78] sm:$0xff] %v834
    %837 = vrot.lane.b32.xlu0 %v749, 111
    %v838 = vpop.permute.xlu0 %837
    %839 = vrot.lane.b32.xlu0 %v750, 111
    %v840 = vpop.permute.xlu0 %839
    %v841 = vsel %vm261, %v838, %v840
    %v842 = vsel %vm261, %v840, %v838
    %v843 = vld [vmem:[%s3 + $0x80] sm:$0xff]
    %v844 = vld [vmem:[%s3 + $0x88] sm:$0xff]
    %v845 = vmul.f32 %v841, %v843
    %v846 = vmul.f32 %v842, %v844
    %847 = vst [vmem:[#allocation2 + $0x80] sm:$0xff] %v845
    %848 = vst [vmem:[#allocation2 + $0x88] sm:$0xff] %v846
    %v849 = vld [vmem:[%s1 + $0x10] sm:$0xff]
    %v850 = vld [vmem:[#allocation2] sm:$0xff]
    %v851 = vld [vmem:[#allocation2 + $0x8] sm:$0xff]
    %v852 = vld [vmem:[#allocation2 + $0x10] sm:$0xff]
    %v853 = vld [vmem:[#allocation2 + $0x18] sm:$0xff]
    %v854 = vld [vmem:[#allocation2 + $0x20] sm:$0xff]
    %v855 = vld [vmem:[#allocation2 + $0x28] sm:$0xff]
    %v856 = vld [vmem:[#allocation2 + $0x30] sm:$0xff]
    %v857 = vld [vmem:[#allocation2 + $0x38] sm:$0xff]
    %v858 = vld [vmem:[#allocation2 + $0x40] sm:$0xff]
    %v859 = vld [vmem:[#allocation2 + $0x48] sm:$0xff]
    %v860 = vld [vmem:[#allocation2 + $0x50] sm:$0xff]
    %v861 = vld [vmem:[#allocation2 + $0x58] sm:$0xff]
    %v862 = vld [vmem:[#allocation2 + $0x60] sm:$0xff]
    %v863 = vld [vmem:[#allocation2 + $0x68] sm:$0xff]
    %v864 = vld [vmem:[#allocation2 + $0x70] sm:$0xff]
    %v865 = vld [vmem:[#allocation2 + $0x78] sm:$0xff]
    %v866 = vld [vmem:[#allocation2 + $0x80] sm:$0xff]
    %v867 = vld [vmem:[#allocation2 + $0x88] sm:$0xff]
    %v869 = vsel %vm309, %v849, 0
    %871 = vmatpush.msra.mxu0 0.0
    %872 = vmatpush.msra.mxu0 0.0
    %873 = vmatpush.msra.mxu0 0.0
    %874 = vmatpush.msra.mxu0 0.0
    %875 = vmatpush.msra.mxu0 0.0
    %876 = vmatpush.msra.mxu0 0.0
    %877 = vmatpush.msra.mxu0 0.0
    %878 = vmatpush.msra.mxu0 %v866
    %879 = vmatpush.msra.mxu0 %v864
    %880 = vmatpush.msra.mxu0 %v862
    %881 = vmatpush.msra.mxu0 %v860
    %882 = vmatpush.msra.mxu0 %v858
    %883 = vmatpush.msra.mxu0 %v856
    %884 = vmatpush.msra.mxu0 %v854
    %885 = vmatpush.msra.mxu0 %v852
    %886 = vmatpush.msra.mxu0 %v850
    %887 = vmatmul.f32.gmra.mxu0 %v869
    %v888 = vpop.f32.mrf.mxu0
    %v889 = vadd.f32 0.0, %v888
    %890 = vdwg.mxu0
    %891 = vmatpush.msra.mxu0 0.0
    %892 = vmatpush.msra.mxu0 0.0
    %893 = vmatpush.msra.mxu0 0.0
    %894 = vmatpush.msra.mxu0 0.0
    %895 = vmatpush.msra.mxu0 0.0
    %896 = vmatpush.msra.mxu0 0.0
    %897 = vmatpush.msra.mxu0 0.0
    %898 = vmatpush.msra.mxu0 %v867
    %899 = vmatpush.msra.mxu0 %v865
    %900 = vmatpush.msra.mxu0 %v863
    %901 = vmatpush.msra.mxu0 %v861
    %902 = vmatpush.msra.mxu0 %v859
    %903 = vmatpush.msra.mxu0 %v857
    %904 = vmatpush.msra.mxu0 %v855
    %905 = vmatpush.msra.mxu0 %v853
    %906 = vmatpush.msra.mxu0 %v851
    %907 = vmatmul.f32.gmra.mxu0 %v869
    %v908 = vpop.f32.mrf.mxu0
    %v909 = vadd.f32 0.0, %v908
    %910 = vdwg.mxu0
    %s911 = sld [smem:[#allocation3 + $0x1]]
    %v912 = vstv %s911
    %v913 = vmul.f32 %v912, %v889
    %v914 = vmul.f32 %v912, %v909
    %v915 = vadd.f32 %v343, %v913
    %v916 = vadd.f32 %v369, %v914
    %917 = vst [vmem:[%s6] sm:$0xff] %v915
    %918 = vst [vmem:[%s6 + $0x8] sm:$0xff] %v916
    // Predicated region
    $region34: #{linear_tester_forward.1} parent=1 // pred_check
      _
    $region35: #{linear_tester_forward.1} parent=1 // pred_check_branch
      %920 = sbr.rel (0) target = $region37
    $region36: #{linear_tester_forward.1} parent=1 // pred_region
      _
    $region37: #{linear_tester_forward.1} parent=1 // pred_fallthru
      _
    // Predicated region
    $region38: #{linear_tester_forward.1} parent=1 // pred_check
      _
    $region39: #{linear_tester_forward.1} parent=1 // pred_check_branch
      %922 = sbr.rel (0) target = $region41
    $region40: #{linear_tester_forward.1} parent=1 // pred_region
      _
    $region41: #{linear_tester_forward.1} parent=1 // pred_fallthru
      _
    %923 = vsyncpa [#allocation4], 1
    %924 = vsyncpa [#allocation5], 1

</llo_original>
